<compile_context>
chip_gen: v6e
topology: v6e:2x2x1
jax: 0.10.0
libtpu: 0.0.40
codegen_flags: <defaults>
</compile_context>

<pallas_src>
import functools

import jax
import jax.numpy as jnp
import numpy as np
from jax import lax
from jax.experimental import pallas as pl
from jax.experimental.pallas import tpu as pltpu


def _round_up(x, m):
    return (x + m - 1) // m * m


def _conv_bn_silu_kernel(x_ref, w_ref, ss_ref, o_ref, *, k, s, oh, ow, cin):
    # x_ref:  (1, Hp, Wp, Cin)    zero-padded NHWC image (bf16)
    # w_ref:  (k*k, Cin, Cout_p)  per-tap weight matrices (bf16), resident
    # ss_ref: (2, Cout_p)         row 0 = BN scale, row 1 = BN shift (f32)
    # o_ref:  (OH*OW, Cout_p)     fused conv+BN+SiLU output rows (f32)
    x = x_ref[0]                                       # (Hp, Wp, Cin)
    acc = None
    # Shift-and-accumulate conv: k*k MXU matmuls, f32 accumulation.
    for kh in range(k):
        for kw in range(k):
            if s == 1:
                patch = x[kh:kh + oh, kw:kw + ow, :]   # (OH, OW, Cin)
            else:
                patch = lax.slice(
                    x, (kh, kw, 0),
                    (kh + s * (oh - 1) + 1, kw + s * (ow - 1) + 1, cin),
                    (s, s, 1))
            patch = patch.reshape(oh * ow, cin)        # lane dim (Cin) unchanged
            tap = jnp.dot(patch, w_ref[kh * k + kw],
                          preferred_element_type=jnp.float32)
            acc = tap if acc is None else acc + tap
    # Fused inference-mode BN (f32) + SiLU epilogue (VPU/EUP, hidden under MXU).
    y = acc * ss_ref[0:1, :] + ss_ref[1:2, :]
    o_ref[...] = (y * jax.nn.sigmoid(y)).astype(o_ref.dtype)


def conv_bn_silu(x, weight, gamma, beta, running_mean, running_var,
                 *, k, s, g, eps=1e-5):
    """x: (N, Cin, H, W) f32; weight: (Cout, Cin//g, k, k) -> (N, Cout, OH, OW)."""
    N, Cin, H, W = x.shape
    Cout = weight.shape[0]
    pad = k // 2
    OH = (H + 2 * pad - k) // s + 1
    OW = (W + 2 * pad - k) // s + 1
    Hp, Wp = H + 2 * pad, W + 2 * pad
    cg_in, cg_out = Cin // g, Cout // g

    # Fused inference-mode BatchNorm affine.
    scale = gamma / jnp.sqrt(running_var + eps)        # (Cout,)
    shift = beta - running_mean * scale                # (Cout,)

    # Layout: cast to bf16, NCHW -> NHWC once, spatial zero-pad once.
    xh = jnp.transpose(x.astype(jnp.bfloat16), (0, 2, 3, 1))
    xh = jnp.pad(xh, ((0, 0), (pad, pad), (pad, pad), (0, 0)))

    # Weights: (Cout, Cin_g, k, k) -> per-tap (Cin, Cout_p).  Groups are fused
    # as a block-diagonal matrix so a single lane-dense matmul handles all of
    # them in one pallas_call.
    Cout_p = _round_up(Cout, 128)                      # lane-dense output width
    wt = jnp.transpose(weight, (2, 3, 1, 0))           # (k, k, Cin_g, Cout)
    if g == 1:
        w_full = wt                                    # (k, k, Cin, Cout)
    else:
        # TODO(synk): block-diagonal group fusion wastes MXU flops by a factor
        # of g; fine for small g, not intended for depthwise conv.
        w_full = jnp.zeros((k, k, Cin, Cout), weight.dtype)
        for gi in range(g):
            w_full = w_full.at[:, :, gi * cg_in:(gi + 1) * cg_in,
                               gi * cg_out:(gi + 1) * cg_out].set(
                wt[..., gi * cg_out:(gi + 1) * cg_out])
    w_full = jnp.pad(w_full, ((0, 0), (0, 0), (0, 0), (0, Cout_p - Cout)))
    w_full = w_full.reshape(k * k, Cin, Cout_p).astype(jnp.bfloat16)

    # Single small (2, Cout_p) block: scale row 0, shift row 1 (f32).
    ss = jnp.stack([jnp.pad(scale, (0, Cout_p - Cout)),
                    jnp.pad(shift, (0, Cout_p - Cout))]).astype(jnp.float32)

    kern = functools.partial(_conv_bn_silu_kernel,
                             k=k, s=s, oh=OH, ow=OW, cin=Cin)
    out = pl.pallas_call(
        kern,
        out_shape=jax.ShapeDtypeStruct((N * OH * OW, Cout_p), jnp.float32),
        grid_spec=pltpu.PrefetchScalarGridSpec(
            num_scalar_prefetch=0,
            grid=(N,),
            in_specs=[
                pl.BlockSpec((1, Hp, Wp, Cin), lambda n: (n, 0, 0, 0)),
                pl.BlockSpec((k * k, Cin, Cout_p), lambda n: (0, 0, 0)),
                pl.BlockSpec((2, Cout_p), lambda n: (0, 0)),
            ],
            out_specs=pl.BlockSpec((OH * OW, Cout_p), lambda n: (n, 0)),
        ),
        compiler_params=pltpu.CompilerParams(
            dimension_semantics=("parallel",),
            vmem_limit_bytes=32 * 1024 * 1024,
        ),
    )(xh, w_full, ss)

    # Strip channel padding; NHWC -> NCHW to match the PyTorch module output.
    # TODO(synk): keep NHWC if the consumer accepts it to save this HBM pass.
    out = out[:, :Cout].reshape(N, OH, OW, Cout).transpose(0, 3, 1, 2)
    return out


def reference(x, weight, gamma, beta, rm, rv, *, k, s, g, eps=1e-5):
    y = lax.conv_general_dilated(
        x, weight, window_strides=(s, s), padding=[(k // 2, k // 2)] * 2,
        dimension_numbers=("NCHW", "OIHW", "NCHW"), feature_group_count=g,
        precision=lax.Precision.HIGHEST)
    y = (y - rm[None, :, None, None]) / jnp.sqrt(rv[None, :, None, None] + eps)
    y = y * gamma[None, :, None, None] + beta[None, :, None, None]
    return y * jax.nn.sigmoid(y)


if __name__ == "__main__":
    # Small shapes consistent with the module: Conv(in_ch=4, out_ch=8, k=3, s=1, g=1)
    N, Cin, H, W = 2, 4, 16, 16
    Cout, k, s, g = 8, 3, 1, 1

    key = jax.random.PRNGKey(0)
    kx, kw_, kg, kb, km, kv = jax.random.split(key, 6)

    x = jax.random.normal(kx, (N, Cin, H, W), dtype=jnp.float32)
    weight = 0.1 * jax.random.normal(kw_, (Cout, Cin // g, k, k), dtype=jnp.float32)
    gamma = jax.random.uniform(kg, (Cout,), dtype=jnp.float32, minval=0.5, maxval=1.5)
    beta = 0.1 * jax.random.normal(kb, (Cout,), dtype=jnp.float32)
    running_mean = 0.1 * jax.random.normal(km, (Cout,), dtype=jnp.float32)
    running_var = jax.random.uniform(kv, (Cout,), dtype=jnp.float32,
                                     minval=0.5, maxval=1.5)

    out = conv_bn_silu(x, weight, gamma, beta, running_mean, running_var,
                       k=k, s=s, g=g)
    out = jax.block_until_ready(out)
    assert out.shape == (N, Cout, H, W), out.shape

    # Tight check: reference with the same bf16 input rounding the MXU uses
    # (products exact, f32 accumulation) -> only summation-order differences.
    ref_bf16 = reference(x.astype(jnp.bfloat16).astype(jnp.float32),
                         weight.astype(jnp.bfloat16).astype(jnp.float32),
                         gamma, beta, running_mean, running_var, k=k, s=s, g=g)
    np.testing.assert_allclose(np.asarray(out), np.asarray(ref_bf16),
                               rtol=1e-3, atol=1e-3)

    # Loose check vs. the full-f32 reference: error is bounded by the bf16
    # rounding of the MXU inputs (standard TPU conv precision policy).
    ref_f32 = reference(x, weight, gamma, beta, running_mean, running_var,
                        k=k, s=s, g=g)
    np.testing.assert_allclose(np.asarray(out), np.asarray(ref_f32),
                               rtol=5e-2, atol=5e-2)

    print("KERNEL_OK")
</pallas_src>

<mosaic_0001>
module attributes {stable_mosaic.version = 11 : i64} {
  func.func @_conv_bn_silu_kernel(%arg0: i32, %arg1: memref<1x18x18x4xbf16, #tpu.memory_space<vmem>>, %arg2: memref<9x4x128xbf16, #tpu.memory_space<vmem>>, %arg3: memref<2x128xf32, #tpu.memory_space<vmem>>, %arg4: memref<256x128xf32, #tpu.memory_space<vmem>>) attributes {dimension_semantics = [#tpu.dimension_semantics<parallel>], iteration_bounds = array<i64: 2>, scalar_prefetch = 0 : i64, scratch_operands = 0 : i64, tpu.core_type = #tpu.core_type<tc>, window_params = [{transform_indices = @transform_0, window_bounds = array<i64: 1, 18, 18, 4>}, {pipeline_mode = #tpu.pipeline_mode<synchronous>, transform_indices = @transform_1, window_bounds = array<i64: 9, 4, 128>}, {pipeline_mode = #tpu.pipeline_mode<synchronous>, transform_indices = @transform_2, window_bounds = array<i64: 2, 128>}, {transform_indices = @transform_3, window_bounds = array<i64: 256, 128>}]} {
    %c0 = arith.constant 0 : index
    %c0_0 = arith.constant 0 : index
    %c0_1 = arith.constant 0 : index
    %c0_2 = arith.constant 0 : index
    %0 = vector.load %arg1[%c0, %c0_0, %c0_1, %c0_2] : memref<1x18x18x4xbf16, #tpu.memory_space<vmem>>, vector<1x18x18x4xbf16>
    %1 = vector.shape_cast %0 : vector<1x18x18x4xbf16> to vector<18x18x4xbf16>
    %2 = vector.extract_strided_slice %1 {offsets = [0, 0, 0], sizes = [16, 16, 4], strides = [1, 1, 1]} : vector<18x18x4xbf16> to vector<16x16x4xbf16>
    %3 = vector.shape_cast %2 : vector<16x16x4xbf16> to vector<256x4xbf16>
    %c0_3 = arith.constant 0 : index
    %c0_4 = arith.constant 0 : index
    %c0_5 = arith.constant 0 : index
    %4 = vector.load %arg2[%c0_3, %c0_4, %c0_5] : memref<9x4x128xbf16, #tpu.memory_space<vmem>>, vector<1x4x128xbf16>
    %5 = vector.shape_cast %4 : vector<1x4x128xbf16> to vector<4x128xbf16>
    %cst = arith.constant dense<0.000000e+00> : vector<256x128xf32>
    %6 = tpu.matmul %3, %5, %cst {dimension_numbers = #tpu.dot_dimension_numbers<[1], [0], [0], [1], [0, 0, 1, 1], [], []>} : vector<256x4xbf16>, vector<4x128xbf16>, vector<256x128xf32> -> vector<256x128xf32>
    %7 = vector.extract_strided_slice %1 {offsets = [0, 1, 0], sizes = [16, 16, 4], strides = [1, 1, 1]} : vector<18x18x4xbf16> to vector<16x16x4xbf16>
    %8 = vector.shape_cast %7 : vector<16x16x4xbf16> to vector<256x4xbf16>
    %c1 = arith.constant 1 : index
    %c0_6 = arith.constant 0 : index
    %c0_7 = arith.constant 0 : index
    %9 = vector.load %arg2[%c1, %c0_6, %c0_7] : memref<9x4x128xbf16, #tpu.memory_space<vmem>>, vector<1x4x128xbf16>
    %10 = vector.shape_cast %9 : vector<1x4x128xbf16> to vector<4x128xbf16>
    %cst_8 = arith.constant dense<0.000000e+00> : vector<256x128xf32>
    %11 = tpu.matmul %8, %10, %cst_8 {dimension_numbers = #tpu.dot_dimension_numbers<[1], [0], [0], [1], [0, 0, 1, 1], [], []>} : vector<256x4xbf16>, vector<4x128xbf16>, vector<256x128xf32> -> vector<256x128xf32>
    %12 = arith.addf %6, %11 : vector<256x128xf32>
    %13 = vector.extract_strided_slice %1 {offsets = [0, 2, 0], sizes = [16, 16, 4], strides = [1, 1, 1]} : vector<18x18x4xbf16> to vector<16x16x4xbf16>
    %14 = vector.shape_cast %13 : vector<16x16x4xbf16> to vector<256x4xbf16>
    %c2 = arith.constant 2 : index
    %c0_9 = arith.constant 0 : index
    %c0_10 = arith.constant 0 : index
    %15 = vector.load %arg2[%c2, %c0_9, %c0_10] : memref<9x4x128xbf16, #tpu.memory_space<vmem>>, vector<1x4x128xbf16>
    %16 = vector.shape_cast %15 : vector<1x4x128xbf16> to vector<4x128xbf16>
    %cst_11 = arith.constant dense<0.000000e+00> : vector<256x128xf32>
    %17 = tpu.matmul %14, %16, %cst_11 {dimension_numbers = #tpu.dot_dimension_numbers<[1], [0], [0], [1], [0, 0, 1, 1], [], []>} : vector<256x4xbf16>, vector<4x128xbf16>, vector<256x128xf32> -> vector<256x128xf32>
    %18 = arith.addf %12, %17 : vector<256x128xf32>
    %19 = vector.extract_strided_slice %1 {offsets = [1, 0, 0], sizes = [16, 16, 4], strides = [1, 1, 1]} : vector<18x18x4xbf16> to vector<16x16x4xbf16>
    %20 = vector.shape_cast %19 : vector<16x16x4xbf16> to vector<256x4xbf16>
    %c3 = arith.constant 3 : index
    %c0_12 = arith.constant 0 : index
    %c0_13 = arith.constant 0 : index
    %21 = vector.load %arg2[%c3, %c0_12, %c0_13] : memref<9x4x128xbf16, #tpu.memory_space<vmem>>, vector<1x4x128xbf16>
    %22 = vector.shape_cast %21 : vector<1x4x128xbf16> to vector<4x128xbf16>
    %cst_14 = arith.constant dense<0.000000e+00> : vector<256x128xf32>
    %23 = tpu.matmul %20, %22, %cst_14 {dimension_numbers = #tpu.dot_dimension_numbers<[1], [0], [0], [1], [0, 0, 1, 1], [], []>} : vector<256x4xbf16>, vector<4x128xbf16>, vector<256x128xf32> -> vector<256x128xf32>
    %24 = arith.addf %18, %23 : vector<256x128xf32>
    %25 = vector.extract_strided_slice %1 {offsets = [1, 1, 0], sizes = [16, 16, 4], strides = [1, 1, 1]} : vector<18x18x4xbf16> to vector<16x16x4xbf16>
    %26 = vector.shape_cast %25 : vector<16x16x4xbf16> to vector<256x4xbf16>
    %c4 = arith.constant 4 : index
    %c0_15 = arith.constant 0 : index
    %c0_16 = arith.constant 0 : index
    %27 = vector.load %arg2[%c4, %c0_15, %c0_16] : memref<9x4x128xbf16, #tpu.memory_space<vmem>>, vector<1x4x128xbf16>
    %28 = vector.shape_cast %27 : vector<1x4x128xbf16> to vector<4x128xbf16>
    %cst_17 = arith.constant dense<0.000000e+00> : vector<256x128xf32>
    %29 = tpu.matmul %26, %28, %cst_17 {dimension_numbers = #tpu.dot_dimension_numbers<[1], [0], [0], [1], [0, 0, 1, 1], [], []>} : vector<256x4xbf16>, vector<4x128xbf16>, vector<256x128xf32> -> vector<256x128xf32>
    %30 = arith.addf %24, %29 : vector<256x128xf32>
    %31 = vector.extract_strided_slice %1 {offsets = [1, 2, 0], sizes = [16, 16, 4], strides = [1, 1, 1]} : vector<18x18x4xbf16> to vector<16x16x4xbf16>
    %32 = vector.shape_cast %31 : vector<16x16x4xbf16> to vector<256x4xbf16>
    %c5 = arith.constant 5 : index
    %c0_18 = arith.constant 0 : index
    %c0_19 = arith.constant 0 : index
    %33 = vector.load %arg2[%c5, %c0_18, %c0_19] : memref<9x4x128xbf16, #tpu.memory_space<vmem>>, vector<1x4x128xbf16>
    %34 = vector.shape_cast %33 : vector<1x4x128xbf16> to vector<4x128xbf16>
    %cst_20 = arith.constant dense<0.000000e+00> : vector<256x128xf32>
    %35 = tpu.matmul %32, %34, %cst_20 {dimension_numbers = #tpu.dot_dimension_numbers<[1], [0], [0], [1], [0, 0, 1, 1], [], []>} : vector<256x4xbf16>, vector<4x128xbf16>, vector<256x128xf32> -> vector<256x128xf32>
    %36 = arith.addf %30, %35 : vector<256x128xf32>
    %37 = vector.extract_strided_slice %1 {offsets = [2, 0, 0], sizes = [16, 16, 4], strides = [1, 1, 1]} : vector<18x18x4xbf16> to vector<16x16x4xbf16>
    %38 = vector.shape_cast %37 : vector<16x16x4xbf16> to vector<256x4xbf16>
    %c6 = arith.constant 6 : index
    %c0_21 = arith.constant 0 : index
    %c0_22 = arith.constant 0 : index
    %39 = vector.load %arg2[%c6, %c0_21, %c0_22] : memref<9x4x128xbf16, #tpu.memory_space<vmem>>, vector<1x4x128xbf16>
    %40 = vector.shape_cast %39 : vector<1x4x128xbf16> to vector<4x128xbf16>
    %cst_23 = arith.constant dense<0.000000e+00> : vector<256x128xf32>
    %41 = tpu.matmul %38, %40, %cst_23 {dimension_numbers = #tpu.dot_dimension_numbers<[1], [0], [0], [1], [0, 0, 1, 1], [], []>} : vector<256x4xbf16>, vector<4x128xbf16>, vector<256x128xf32> -> vector<256x128xf32>
    %42 = arith.addf %36, %41 : vector<256x128xf32>
    %43 = vector.extract_strided_slice %1 {offsets = [2, 1, 0], sizes = [16, 16, 4], strides = [1, 1, 1]} : vector<18x18x4xbf16> to vector<16x16x4xbf16>
    %44 = vector.shape_cast %43 : vector<16x16x4xbf16> to vector<256x4xbf16>
    %c7 = arith.constant 7 : index
    %c0_24 = arith.constant 0 : index
    %c0_25 = arith.constant 0 : index
    %45 = vector.load %arg2[%c7, %c0_24, %c0_25] : memref<9x4x128xbf16, #tpu.memory_space<vmem>>, vector<1x4x128xbf16>
    %46 = vector.shape_cast %45 : vector<1x4x128xbf16> to vector<4x128xbf16>
    %cst_26 = arith.constant dense<0.000000e+00> : vector<256x128xf32>
    %47 = tpu.matmul %44, %46, %cst_26 {dimension_numbers = #tpu.dot_dimension_numbers<[1], [0], [0], [1], [0, 0, 1, 1], [], []>} : vector<256x4xbf16>, vector<4x128xbf16>, vector<256x128xf32> -> vector<256x128xf32>
    %48 = arith.addf %42, %47 : vector<256x128xf32>
    %49 = vector.extract_strided_slice %1 {offsets = [2, 2, 0], sizes = [16, 16, 4], strides = [1, 1, 1]} : vector<18x18x4xbf16> to vector<16x16x4xbf16>
    %50 = vector.shape_cast %49 : vector<16x16x4xbf16> to vector<256x4xbf16>
    %c8 = arith.constant 8 : index
    %c0_27 = arith.constant 0 : index
    %c0_28 = arith.constant 0 : index
    %51 = vector.load %arg2[%c8, %c0_27, %c0_28] : memref<9x4x128xbf16, #tpu.memory_space<vmem>>, vector<1x4x128xbf16>
    %52 = vector.shape_cast %51 : vector<1x4x128xbf16> to vector<4x128xbf16>
    %cst_29 = arith.constant dense<0.000000e+00> : vector<256x128xf32>
    %53 = tpu.matmul %50, %52, %cst_29 {dimension_numbers = #tpu.dot_dimension_numbers<[1], [0], [0], [1], [0, 0, 1, 1], [], []>} : vector<256x4xbf16>, vector<4x128xbf16>, vector<256x128xf32> -> vector<256x128xf32>
    %54 = arith.addf %48, %53 : vector<256x128xf32>
    %c0_30 = arith.constant 0 : index
    %c0_31 = arith.constant 0 : index
    %55 = vector.load %arg3[%c0_30, %c0_31] : memref<2x128xf32, #tpu.memory_space<vmem>>, vector<1x128xf32>
    %56 = vector.broadcast %55 : vector<1x128xf32> to vector<256x128xf32>
    %57 = arith.mulf %54, %56 : vector<256x128xf32>
    %c1_32 = arith.constant 1 : index
    %c0_33 = arith.constant 0 : index
    %58 = vector.load %arg3[%c1_32, %c0_33] : memref<2x128xf32, #tpu.memory_space<vmem>>, vector<1x128xf32>
    %59 = vector.broadcast %58 : vector<1x128xf32> to vector<256x128xf32>
    %60 = arith.addf %57, %59 : vector<256x128xf32>
    %61 = arith.negf %60 : vector<256x128xf32>
    %62 = math.exp %61 : vector<256x128xf32>
    %cst_34 = arith.constant 1.000000e+00 : f32
    %63 = vector.broadcast %cst_34 : f32 to vector<256x128xf32>
    %64 = arith.addf %63, %62 : vector<256x128xf32>
    %65 = arith.divf %63, %64 : vector<256x128xf32>
    %66 = arith.mulf %60, %65 : vector<256x128xf32>
    %c0_35 = arith.constant 0 : index
    %c0_36 = arith.constant 0 : index
    %67 = vector.load %arg4[%c0_35, %c0_36] : memref<256x128xf32, #tpu.memory_space<vmem>>, vector<256x128xf32>
    tpu.vector_store %arg4[%c0_35, %c0_36], %66 {strides = array<i32>} : memref<256x128xf32, #tpu.memory_space<vmem>>, vector<256x128xf32>,
    return
  }
  func.func @transform_0(%arg0: i32) -> (i32, i32, i32, i32) {
    %c0_i32 = arith.constant 0 : i32
    %c0_i32_0 = arith.constant 0 : i32
    %c0_i32_1 = arith.constant 0 : i32
    %c0_i32_2 = arith.constant 0 : i32
    return %arg0, %c0_i32, %c0_i32_0, %c0_i32_1 : i32, i32, i32, i32
  }
  func.func @transform_1(%arg0: i32) -> (i32, i32, i32) {
    %c0_i32 = arith.constant 0 : i32
    %c0_i32_0 = arith.constant 0 : i32
    %c0_i32_1 = arith.constant 0 : i32
    %c0_i32_2 = arith.constant 0 : i32
    return %c0_i32, %c0_i32_0, %c0_i32_1 : i32, i32, i32
  }
  func.func @transform_2(%arg0: i32) -> (i32, i32) {
    %c0_i32 = arith.constant 0 : i32
    %c0_i32_0 = arith.constant 0 : i32
    %c0_i32_1 = arith.constant 0 : i32
    return %c0_i32, %c0_i32_0 : i32, i32
  }
  func.func @transform_3(%arg0: i32) -> (i32, i32) {
    %c0_i32 = arith.constant 0 : i32
    %c0_i32_0 = arith.constant 0 : i32
    return %arg0, %c0_i32 : i32, i32
  }
}

</mosaic_0001>

<llo_original>
// kernel: tpu_custom_call.1
$region0: #{tpu_custom_call.1}
  #allocation0 [shape = 'u32[]', space=smem, size = 0x4, offset = 0x4, fixed_abs, tag = 'smem constant byte address 0x4 - core index']
  #allocation1 [shape = 'u32[144,128]{1,0:T(1,128)}', space=vmem, size = 0x12000, scoped, tag = 'internal scratch']
  %s0 = inlined_call_operand.vmem [shape: bf16[2,18,18,4], index: 0, kind: input, shape index: {}]
  %s1 = inlined_call_operand.vmem [shape: bf16[9,4,128], index: 1, kind: input, shape index: {}]
  %s2 = inlined_call_operand.vmem [shape: f32[2,128], index: 2, kind: input, shape index: {}]
  %s3 = inlined_call_operand.hbm [shape: f32[512,128], index: 3, kind: output, shape index: {}]
  %s4 = sld [smem:[#allocation0]]
  $region45: #{tpu_custom_call.1} parent=0
    _
  %s6 = ssub.s32 1, %s4
  %s7 = scalar_select 0, %s6, %s4
  $region1: #{tpu_custom_call.1} parent=0
    #allocation2 [shape = 'u8[262144]{0}', space=vmem, size = 0x40000, scoped, tag = 'output window, operand 0']
    #allocation3 [shape = 's32[2]{0}', space=sflag, size = 0x8, scoped, tag = 'scoped memory for tpu_custom_call.1']
    %8 = vsyncpa [#allocation3], 0
    %s9 = scalar_lea.sflag [#allocation3], 1
    %10 = vsyncpa %s9, 0
    loop: start=0, step=1, limit=4
    $region2: #{tpu_custom_call.1} parent=1 // loop_pre_header
      _
    $region3: #{tpu_custom_call.1} parent=1 // loop_header
      %s12 = sphi 0, %s16
      %p13 = scmp.ge.s32.totalorder %s12, 4
      %s22 = sphi 0, %s24
      %s25 = sphi 0, %s22
      %s26 = sphi 0, %s25
      %s42 = sphi 0, %s26
      %s46 = sphi 0, %s46
      %s48 = sphi 0, %s46
      %s49 = sphi 0, %s48
      %s63 = sphi 0, %s49
      %s67 = sphi 0, %s67
      %s69 = sphi 0, %s67
      %s70 = sphi 0, %s69
      %s84 = sphi 0, %s70
      %s90 = sphi 0, %s92
      %s93 = sphi 0, %s90
      %s94 = sphi 0, %s93
      %s110 = sphi 0, %s94
    $region4: #{tpu_custom_call.1} parent=1 // loop_header_branch
      %15 = sbr.rel (%p13) target = $region8
    $region5: #{tpu_custom_call.1} parent=1 // loop_body
      %s17 = ssub.s32 %s12, 1
      %s18 = ssub.s32 %s12, 2
      %s19 = sadd.s32 %s12, 1
      %s20 = ssub.s32 %s12, %s19
      %p21 = scmp.eq.s32.totalorder %s20, 0
      %s23 = sadd.s32 %s22, 1
      %s24 = scalar_select %p21, %s22, %s23
      %p27 = pneg %p21
      %p28 = scmp.eq.s32.totalorder %s12, 1
      %p29 = por %p27, %p28
      %p30 = scmp.ne.s32.totalorder %s22, %s25
      %p31 = scmp.eq.s32.totalorder %s12, 0
      %p32 = por %p30, %p31
      %p33 = scmp.ne.s32.totalorder %s22, %s25
      %p34 = scmp.eq.s32.totalorder %s17, 1
      %p35 = por %p33, %p34
      %p36 = scmp.ne.s32.totalorder %s25, %s26
      %p37 = scmp.eq.s32.totalorder %s17, 0
      %p38 = por %p36, %p37
      %p39 = scmp.ne.s32.totalorder %s25, %s26
      %p40 = scmp.eq.s32.totalorder %s18, 1
      %p41 = por %p39, %p40
      %p43 = scmp.ne.s32.totalorder %s26, %s42
      %p44 = scmp.eq.s32.totalorder %s18, 0
      %p45 = por %p43, %p44
      %s47 = sadd.s32 %s46, 1
      %p50 = scmp.eq.s32.totalorder %s12, 1
      %p51 = scmp.ne.s32.totalorder %s46, %s48
      %p52 = scmp.eq.s32.totalorder %s12, 0
      %p53 = por %p51, %p52
      %p54 = scmp.ne.s32.totalorder %s46, %s48
      %p55 = scmp.eq.s32.totalorder %s17, 1
      %p56 = por %p54, %p55
      %p57 = scmp.ne.s32.totalorder %s48, %s49
      %p58 = scmp.eq.s32.totalorder %s17, 0
      %p59 = por %p57, %p58
      %p60 = scmp.ne.s32.totalorder %s48, %s49
      %p61 = scmp.eq.s32.totalorder %s18, 1
      %p62 = por %p60, %p61
      %p64 = scmp.ne.s32.totalorder %s49, %s63
      %p65 = scmp.eq.s32.totalorder %s18, 0
      %p66 = por %p64, %p65
      %s68 = sadd.s32 %s67, 1
      %p71 = scmp.eq.s32.totalorder %s12, 1
      %p72 = scmp.ne.s32.totalorder %s67, %s69
      %p73 = scmp.eq.s32.totalorder %s12, 0
      %p74 = por %p72, %p73
      %p75 = scmp.ne.s32.totalorder %s67, %s69
      %p76 = scmp.eq.s32.totalorder %s17, 1
      %p77 = por %p75, %p76
      %p78 = scmp.ne.s32.totalorder %s69, %s70
      %p79 = scmp.eq.s32.totalorder %s17, 0
      %p80 = por %p78, %p79
      %p81 = scmp.ne.s32.totalorder %s69, %s70
      %p82 = scmp.eq.s32.totalorder %s18, 1
      %p83 = por %p81, %p82
      %p85 = scmp.ne.s32.totalorder %s70, %s84
      %p86 = scmp.eq.s32.totalorder %s18, 0
      %p87 = por %p85, %p86
      %s88 = ssub.s32 %s12, %s19
      %p89 = scmp.eq.s32.totalorder %s88, 0
      %s91 = sadd.s32 %s90, 1
      %s92 = scalar_select %p89, %s90, %s91
      %p95 = pneg %p89
      %p96 = scmp.eq.s32.totalorder %s12, 1
      %p97 = por %p95, %p96
      %p98 = scmp.ne.s32.totalorder %s90, %s93
      %p99 = scmp.eq.s32.totalorder %s12, 0
      %p100 = por %p98, %p99
      %p101 = scmp.ne.s32.totalorder %s90, %s93
      %p102 = scmp.eq.s32.totalorder %s17, 1
      %p103 = por %p101, %p102
      %p104 = scmp.ne.s32.totalorder %s93, %s94
      %p105 = scmp.eq.s32.totalorder %s17, 0
      %p106 = por %p104, %p105
      %p107 = scmp.ne.s32.totalorder %s93, %s94
      %p108 = scmp.eq.s32.totalorder %s18, 1
      %p109 = por %p107, %p108
      %p111 = scmp.ne.s32.totalorder %s94, %s110
      %p112 = scmp.eq.s32.totalorder %s18, 0
      %p113 = por %p111, %p112
      %p114 = scmp.le.s32.totalorder 1, %s12
      %p115 = scmp.lt.s32.totalorder %s12, 3
      %p116 = pnand %p114, %p115
      %p117 = pneg %p116
      // Predicated region
      $region9: #{tpu_custom_call.1} parent=5 // pred_check
        _
      $region10: #{tpu_custom_call.1} parent=5 // pred_check_branch
        %119 = sbr.rel (%p116) target = $region12
      $region11: #{tpu_custom_call.1} parent=5 // pred_region
        %s120 = ssub.s32 %s12, 1
        // Predicated region
        $region13: #{tpu_custom_call.1} parent=11 // pred_check
          %p121 = pneg %p59
        $region14: #{tpu_custom_call.1} parent=11 // pred_check_branch
          %123 = sbr.rel (%p121) target = $region16
        $region15: #{tpu_custom_call.1} parent=11 // pred_region
          _
        $region16: #{tpu_custom_call.1} parent=11 // pred_fallthru
          _
        // Predicated region
        $region17: #{tpu_custom_call.1} parent=11 // pred_check
          %p124 = pneg %p80
        $region18: #{tpu_custom_call.1} parent=11 // pred_check_branch
          %126 = sbr.rel (%p124) target = $region20
        $region19: #{tpu_custom_call.1} parent=11 // pred_region
          _
        $region20: #{tpu_custom_call.1} parent=11 // pred_fallthru
          _
      $region12: #{tpu_custom_call.1} parent=5 // pred_fallthru
        _
      %p127 = scmp.lt.s32.totalorder %s12, 2
      // Predicated region
      $region21: #{tpu_custom_call.1} parent=5 // pred_check
        %p128 = pneg %p127
      $region22: #{tpu_custom_call.1} parent=5 // pred_check_branch
        %130 = sbr.rel (%p128) target = $region24
      $region23: #{tpu_custom_call.1} parent=5 // pred_region
        // Predicated region
        $region25: #{tpu_custom_call.1} parent=23 // pred_check
          %p131 = pneg %p32
        $region26: #{tpu_custom_call.1} parent=23 // pred_check_branch
          %133 = sbr.rel (%p131) target = $region28
        $region27: #{tpu_custom_call.1} parent=23 // pred_region
          %p134 = scmp.lt.s32.totalorder %s12, 1
          %s135 = scalar_select %p134, %s12, 1
          %s136 = smul.addr %s135, 54
          %s137 = smul.addr %s136, 4
          %s138 = scalar_lea.vmem %s0, %s137
        $region28: #{tpu_custom_call.1} parent=23 // pred_fallthru
          _
      $region24: #{tpu_custom_call.1} parent=5 // pred_fallthru
        _
      %p139 = scmp.le.s32.totalorder 1, %s12
      %p140 = scmp.lt.s32.totalorder %s12, 3
      %p141 = pnand %p139, %p140
      %p142 = pneg %p141
      // Predicated region
      $region29: #{tpu_custom_call.1} parent=5 // pred_check
        _
      $region30: #{tpu_custom_call.1} parent=5 // pred_check_branch
        %144 = sbr.rel (%p141) target = $region32
      $region31: #{tpu_custom_call.1} parent=5 // pred_region
        %s145 = ssub.s32 %s12, 1
        %p146 = scmp.lt.s32.totalorder %s17, 1
        %s147 = scalar_select %p146, %s17, 1
        %s148 = smul.addr %s147, 54
        %s149 = smul.addr %s148, 4
        %s150 = scalar_lea.vmem %s0, %s149
        %p151 = pneg %p38
        %p152 = pneg %p35
        %p153 = pneg %p59
        %p154 = pneg %p56
        %p155 = pneg %p80
        %p156 = pneg %p77
        %p157 = pneg %p106
        %p158 = pneg %p103
        %s159 = sand.u32 %s93, 1
        %s160 = scalar_lea.sflag [#allocation3], %s159
        %s161 = sand.u32 %s93, 1
        %s162 = smul.addr %s161, 256
        %s163 = scalar_lea.vmem [#allocation2], %s162
        %p164 = scmp.lt.s32.totalorder %s17, 1
        %s165 = scalar_select %p164, %s17, 1
        %s166 = smul.addr %s165, 54
        %s167 = smul.addr %s166, 4
        %s168 = scalar_lea.vmem %s0, %s167
        %s169 = smul.u32 32, %s17
        %v171 = vld [vmem:[%s168] sm:$0xf]
        %v172 = vld [vmem:[%s168 + $0x4] sm:$0xf]
        %v173 = vld [vmem:[%s168 + $0x8] sm:$0x1]
        %v174 = vld [vmem:[%s168 + $0xc] sm:$0xf]
        %v175 = vld [vmem:[%s168 + $0x10] sm:$0xf]
        %v176 = vld [vmem:[%s168 + $0x14] sm:$0x1]
        %v177 = vld [vmem:[%s168 + $0x18] sm:$0xf]
        %v178 = vld [vmem:[%s168 + $0x1c] sm:$0xf]
        %v179 = vld [vmem:[%s168 + $0x20] sm:$0x1]
        %v180 = vld [vmem:[%s168 + $0x24] sm:$0xf]
        %v181 = vld [vmem:[%s168 + $0x28] sm:$0xf]
        %v182 = vld [vmem:[%s168 + $0x2c] sm:$0x1]
        %v183 = vld [vmem:[%s168 + $0x30] sm:$0xf]
        %v184 = vld [vmem:[%s168 + $0x34] sm:$0xf]
        %v185 = vld [vmem:[%s168 + $0x38] sm:$0x1]
        %v186 = vld [vmem:[%s168 + $0x3c] sm:$0xf]
        %v187 = vld [vmem:[%s168 + $0x40] sm:$0xf]
        %v188 = vld [vmem:[%s168 + $0x44] sm:$0x1]
        %v189 = vld [vmem:[%s168 + $0x48] sm:$0xf]
        %v190 = vld [vmem:[%s168 + $0x4c] sm:$0xf]
        %v191 = vld [vmem:[%s168 + $0x50] sm:$0x1]
        %v192 = vld [vmem:[%s168 + $0x54] sm:$0xf]
        %v193 = vld [vmem:[%s168 + $0x58] sm:$0xf]
        %v194 = vld [vmem:[%s168 + $0x5c] sm:$0x1]
        %v195 = vld [vmem:[%s168 + $0x60] sm:$0xf]
        %v196 = vld [vmem:[%s168 + $0x64] sm:$0xf]
        %v197 = vld [vmem:[%s168 + $0x68] sm:$0x1]
        %v198 = vld [vmem:[%s168 + $0x6c] sm:$0xf]
        %v199 = vld [vmem:[%s168 + $0x70] sm:$0xf]
        %v200 = vld [vmem:[%s168 + $0x74] sm:$0x1]
        %v201 = vld [vmem:[%s168 + $0x78] sm:$0xf]
        %v202 = vld [vmem:[%s168 + $0x7c] sm:$0xf]
        %v203 = vld [vmem:[%s168 + $0x80] sm:$0x1]
        %v204 = vld [vmem:[%s168 + $0x84] sm:$0xf]
        %v205 = vld [vmem:[%s168 + $0x88] sm:$0xf]
        %v206 = vld [vmem:[%s168 + $0x8c] sm:$0x1]
        %v207 = vld [vmem:[%s168 + $0x90] sm:$0xf]
        %v208 = vld [vmem:[%s168 + $0x94] sm:$0xf]
        %v209 = vld [vmem:[%s168 + $0x98] sm:$0x1]
        %v210 = vld [vmem:[%s168 + $0x9c] sm:$0xf]
        %v211 = vld [vmem:[%s168 + $0xa0] sm:$0xf]
        %v212 = vld [vmem:[%s168 + $0xa4] sm:$0x1]
        %v213 = vld [vmem:[%s168 + $0xa8] sm:$0xf]
        %v214 = vld [vmem:[%s168 + $0xac] sm:$0xf]
        %v215 = vld [vmem:[%s168 + $0xb0] sm:$0x1]
        %v216 = vld [vmem:[%s168 + $0xb4] sm:$0xf]
        %v217 = vld [vmem:[%s168 + $0xb8] sm:$0xf]
        %v218 = vld [vmem:[%s168 + $0xbc] sm:$0x1]
        %v219 = vld [vmem:[%s168 + $0xc0] sm:$0xf]
        %v220 = vld [vmem:[%s168 + $0xc4] sm:$0xf]
        %v221 = vld [vmem:[%s168 + $0xc8] sm:$0x1]
        %v222 = vld [vmem:[%s168 + $0xcc] sm:$0xf]
        %v223 = vld [vmem:[%s168 + $0xd0] sm:$0xf]
        %v224 = vld [vmem:[%s168 + $0xd4] sm:$0x1]
        %v225 = vld [vmem:[%s1] sm:$0x3]
        %vm226 = vsmask.f32 3328
        %vm227 = vsmask.f32 7440
        %vm228 = vmor %vm226, %vm227
        %v230 = vshrl.u32 %v171, 16
        %v232 = vrot.slane %v230, 4
        %v233 = vshll.u32 %v171, 16
        %v235 = vrot.slane %v233, 5
        %v236 = vor.u32 %v232, %v235
        %v237 = vrot.slane %v236, 4
        %v239 = vshll.u32 %v172, 16
        %v241 = vrot.slane %v239, 5
        %v242 = vsel %vm228, %v237, %v241
        %v243 = vshrl.u32 %v172, 16
        %v245 = vrot.slane %v243, 4
        %v246 = vor.u32 %v245, %v241
        %v247 = vrot.slane %v246, 4
        %v249 = vshll.u32 %v173, 16
        %v251 = vrot.slane %v249, 5
        %v252 = vsel %vm228, %v247, %v251
        %v254 = vshrl.u32 %v174, 16
        %v256 = vrot.slane %v254, 4
        %v257 = vshll.u32 %v174, 16
        %v259 = vrot.slane %v257, 5
        %v260 = vor.u32 %v256, %v259
        %v261 = vrot.slane %v260, 4
        %v263 = vshll.u32 %v175, 16
        %v265 = vrot.slane %v263, 5
        %v266 = vsel %vm228, %v261, %v265
        %v267 = vshrl.u32 %v175, 16
        %v269 = vrot.slane %v267, 4
        %v270 = vor.u32 %v269, %v265
        %v271 = vrot.slane %v270, 4
        %v273 = vshll.u32 %v176, 16
        %v275 = vrot.slane %v273, 5
        %v276 = vsel %vm228, %v271, %v275
        %v278 = vshrl.u32 %v177, 16
        %v280 = vrot.slane %v278, 4
        %v281 = vshll.u32 %v177, 16
        %v283 = vrot.slane %v281, 5
        %v284 = vor.u32 %v280, %v283
        %v285 = vrot.slane %v284, 4
        %v287 = vshll.u32 %v178, 16
        %v289 = vrot.slane %v287, 5
        %v290 = vsel %vm228, %v285, %v289
        %v291 = vshrl.u32 %v178, 16
        %v293 = vrot.slane %v291, 4
        %v294 = vor.u32 %v293, %v289
        %v295 = vrot.slane %v294, 4
        %v297 = vshll.u32 %v179, 16
        %v299 = vrot.slane %v297, 5
        %v300 = vsel %vm228, %v295, %v299
        %v302 = vshrl.u32 %v180, 16
        %v304 = vrot.slane %v302, 4
        %v305 = vshll.u32 %v180, 16
        %v307 = vrot.slane %v305, 5
        %v308 = vor.u32 %v304, %v307
        %v309 = vrot.slane %v308, 4
        %v311 = vshll.u32 %v181, 16
        %v313 = vrot.slane %v311, 5
        %v314 = vsel %vm228, %v309, %v313
        %v315 = vshrl.u32 %v181, 16
        %v317 = vrot.slane %v315, 4
        %v318 = vor.u32 %v317, %v313
        %v319 = vrot.slane %v318, 4
        %v321 = vshll.u32 %v182, 16
        %v323 = vrot.slane %v321, 5
        %v324 = vsel %vm228, %v319, %v323
        %v326 = vshrl.u32 %v183, 16
        %v328 = vrot.slane %v326, 4
        %v329 = vshll.u32 %v183, 16
        %v331 = vrot.slane %v329, 5
        %v332 = vor.u32 %v328, %v331
        %v333 = vrot.slane %v332, 4
        %v335 = vshll.u32 %v184, 16
        %v337 = vrot.slane %v335, 5
        %v338 = vsel %vm228, %v333, %v337
        %v339 = vshrl.u32 %v184, 16
        %v341 = vrot.slane %v339, 4
        %v342 = vor.u32 %v341, %v337
        %v343 = vrot.slane %v342, 4
        %v345 = vshll.u32 %v185, 16
        %v347 = vrot.slane %v345, 5
        %v348 = vsel %vm228, %v343, %v347
        %v350 = vshrl.u32 %v186, 16
        %v352 = vrot.slane %v350, 4
        %v353 = vshll.u32 %v186, 16
        %v355 = vrot.slane %v353, 5
        %v356 = vor.u32 %v352, %v355
        %v357 = vrot.slane %v356, 4
        %v359 = vshll.u32 %v187, 16
        %v361 = vrot.slane %v359, 5
        %v362 = vsel %vm228, %v357, %v361
        %v363 = vshrl.u32 %v187, 16
        %v365 = vrot.slane %v363, 4
        %v366 = vor.u32 %v365, %v361
        %v367 = vrot.slane %v366, 4
        %v369 = vshll.u32 %v188, 16
        %v371 = vrot.slane %v369, 5
        %v372 = vsel %vm228, %v367, %v371
        %v374 = vshrl.u32 %v189, 16
        %v376 = vrot.slane %v374, 4
        %v377 = vshll.u32 %v189, 16
        %v379 = vrot.slane %v377, 5
        %v380 = vor.u32 %v376, %v379
        %v381 = vrot.slane %v380, 4
        %v383 = vshll.u32 %v190, 16
        %v385 = vrot.slane %v383, 5
        %v386 = vsel %vm228, %v381, %v385
        %v387 = vshrl.u32 %v190, 16
        %v389 = vrot.slane %v387, 4
        %v390 = vor.u32 %v389, %v385
        %v391 = vrot.slane %v390, 4
        %v393 = vshll.u32 %v191, 16
        %v395 = vrot.slane %v393, 5
        %v396 = vsel %vm228, %v391, %v395
        %v398 = vshrl.u32 %v192, 16
        %v400 = vrot.slane %v398, 4
        %v401 = vshll.u32 %v192, 16
        %v403 = vrot.slane %v401, 5
        %v404 = vor.u32 %v400, %v403
        %v405 = vrot.slane %v404, 4
        %v407 = vshll.u32 %v193, 16
        %v409 = vrot.slane %v407, 5
        %v410 = vsel %vm228, %v405, %v409
        %v411 = vshrl.u32 %v193, 16
        %v413 = vrot.slane %v411, 4
        %v414 = vor.u32 %v413, %v409
        %v415 = vrot.slane %v414, 4
        %v417 = vshll.u32 %v194, 16
        %v419 = vrot.slane %v417, 5
        %v420 = vsel %vm228, %v415, %v419
        %v422 = vshrl.u32 %v195, 16
        %v424 = vrot.slane %v422, 4
        %v425 = vshll.u32 %v195, 16
        %v427 = vrot.slane %v425, 5
        %v428 = vor.u32 %v424, %v427
        %v429 = vrot.slane %v428, 4
        %v431 = vshll.u32 %v196, 16
        %v433 = vrot.slane %v431, 5
        %v434 = vsel %vm228, %v429, %v433
        %v435 = vshrl.u32 %v196, 16
        %v437 = vrot.slane %v435, 4
        %v438 = vor.u32 %v437, %v433
        %v439 = vrot.slane %v438, 4
        %v441 = vshll.u32 %v197, 16
        %v443 = vrot.slane %v441, 5
        %v444 = vsel %vm228, %v439, %v443
        %v446 = vshrl.u32 %v198, 16
        %v448 = vrot.slane %v446, 4
        %v449 = vshll.u32 %v198, 16
        %v451 = vrot.slane %v449, 5
        %v452 = vor.u32 %v448, %v451
        %v453 = vrot.slane %v452, 4
        %v455 = vshll.u32 %v199, 16
        %v457 = vrot.slane %v455, 5
        %v458 = vsel %vm228, %v453, %v457
        %v459 = vshrl.u32 %v199, 16
        %v461 = vrot.slane %v459, 4
        %v462 = vor.u32 %v461, %v457
        %v463 = vrot.slane %v462, 4
        %v465 = vshll.u32 %v200, 16
        %v467 = vrot.slane %v465, 5
        %v468 = vsel %vm228, %v463, %v467
        %v470 = vshrl.u32 %v201, 16
        %v472 = vrot.slane %v470, 4
        %v473 = vshll.u32 %v201, 16
        %v475 = vrot.slane %v473, 5
        %v476 = vor.u32 %v472, %v475
        %v477 = vrot.slane %v476, 4
        %v479 = vshll.u32 %v202, 16
        %v481 = vrot.slane %v479, 5
        %v482 = vsel %vm228, %v477, %v481
        %v483 = vshrl.u32 %v202, 16
        %v485 = vrot.slane %v483, 4
        %v486 = vor.u32 %v485, %v481
        %v487 = vrot.slane %v486, 4
        %v489 = vshll.u32 %v203, 16
        %v491 = vrot.slane %v489, 5
        %v492 = vsel %vm228, %v487, %v491
        %v494 = vshrl.u32 %v204, 16
        %v496 = vrot.slane %v494, 4
        %v497 = vshll.u32 %v204, 16
        %v499 = vrot.slane %v497, 5
        %v500 = vor.u32 %v496, %v499
        %v501 = vrot.slane %v500, 4
        %v503 = vshll.u32 %v205, 16
        %v505 = vrot.slane %v503, 5
        %v506 = vsel %vm228, %v501, %v505
        %v507 = vshrl.u32 %v205, 16
        %v509 = vrot.slane %v507, 4
        %v510 = vor.u32 %v509, %v505
        %v511 = vrot.slane %v510, 4
        %v513 = vshll.u32 %v206, 16
        %v515 = vrot.slane %v513, 5
        %v516 = vsel %vm228, %v511, %v515
        %v518 = vshrl.u32 %v207, 16
        %v520 = vrot.slane %v518, 4
        %v521 = vshll.u32 %v207, 16
        %v523 = vrot.slane %v521, 5
        %v524 = vor.u32 %v520, %v523
        %v525 = vrot.slane %v524, 4
        %v527 = vshll.u32 %v208, 16
        %v529 = vrot.slane %v527, 5
        %v530 = vsel %vm228, %v525, %v529
        %v531 = vshrl.u32 %v208, 16
        %v533 = vrot.slane %v531, 4
        %v534 = vor.u32 %v533, %v529
        %v535 = vrot.slane %v534, 4
        %v537 = vshll.u32 %v209, 16
        %v539 = vrot.slane %v537, 5
        %v540 = vsel %vm228, %v535, %v539
        %v542 = vshrl.u32 %v210, 16
        %v544 = vrot.slane %v542, 4
        %v545 = vshll.u32 %v210, 16
        %v547 = vrot.slane %v545, 5
        %v548 = vor.u32 %v544, %v547
        %v549 = vrot.slane %v548, 4
        %v551 = vshll.u32 %v211, 16
        %v553 = vrot.slane %v551, 5
        %v554 = vsel %vm228, %v549, %v553
        %v555 = vshrl.u32 %v211, 16
        %v557 = vrot.slane %v555, 4
        %v558 = vor.u32 %v557, %v553
        %v559 = vrot.slane %v558, 4
        %v561 = vshll.u32 %v212, 16
        %v563 = vrot.slane %v561, 5
        %v564 = vsel %vm228, %v559, %v563
        %v566 = vshrl.u32 %v213, 16
        %v568 = vrot.slane %v566, 4
        %v569 = vshll.u32 %v213, 16
        %v571 = vrot.slane %v569, 5
        %v572 = vor.u32 %v568, %v571
        %v573 = vrot.slane %v572, 4
        %v575 = vshll.u32 %v214, 16
        %v577 = vrot.slane %v575, 5
        %v578 = vsel %vm228, %v573, %v577
        %v579 = vshrl.u32 %v214, 16
        %v581 = vrot.slane %v579, 4
        %v582 = vor.u32 %v581, %v577
        %v583 = vrot.slane %v582, 4
        %v585 = vshll.u32 %v215, 16
        %v587 = vrot.slane %v585, 5
        %v588 = vsel %vm228, %v583, %v587
        %v590 = vshrl.u32 %v216, 16
        %v592 = vrot.slane %v590, 4
        %v593 = vshll.u32 %v216, 16
        %v595 = vrot.slane %v593, 5
        %v596 = vor.u32 %v592, %v595
        %v597 = vrot.slane %v596, 4
        %v599 = vshll.u32 %v217, 16
        %v601 = vrot.slane %v599, 5
        %v602 = vsel %vm228, %v597, %v601
        %v603 = vshrl.u32 %v217, 16
        %v605 = vrot.slane %v603, 4
        %v606 = vor.u32 %v605, %v601
        %v607 = vrot.slane %v606, 4
        %v609 = vshll.u32 %v218, 16
        %v611 = vrot.slane %v609, 5
        %v612 = vsel %vm228, %v607, %v611
        %s613 = scalar_lea.vmem %s1, 2
        %v614 = vld [vmem:[%s613] sm:$0x3]
        %v615 = vunpack.c.l.b16 %v242
        %v616 = vunpack.c.l.b16 %v252
        %v617 = vunpack.c.l.b16 %v266
        %v618 = vunpack.c.l.b16 %v276
        %v619 = vunpack.c.l.b16 %v290
        %v620 = vunpack.c.l.b16 %v300
        %v621 = vunpack.c.l.b16 %v314
        %v622 = vunpack.c.l.b16 %v324
        %v623 = vunpack.c.l.b16 %v338
        %v624 = vunpack.c.l.b16 %v348
        %v625 = vunpack.c.l.b16 %v362
        %v626 = vunpack.c.l.b16 %v372
        %v627 = vunpack.c.l.b16 %v386
        %v628 = vunpack.c.l.b16 %v396
        %v629 = vunpack.c.l.b16 %v410
        %v630 = vunpack.c.l.b16 %v420
        %v631 = vunpack.c.l.b16 %v434
        %v632 = vunpack.c.l.b16 %v444
        %v633 = vunpack.c.l.b16 %v458
        %v634 = vunpack.c.l.b16 %v468
        %v635 = vunpack.c.l.b16 %v482
        %v636 = vunpack.c.l.b16 %v492
        %v637 = vunpack.c.l.b16 %v506
        %v638 = vunpack.c.l.b16 %v516
        %v639 = vunpack.c.l.b16 %v530
        %v640 = vunpack.c.l.b16 %v540
        %v641 = vunpack.c.l.b16 %v554
        %v642 = vunpack.c.l.b16 %v564
        %v643 = vunpack.c.l.b16 %v578
        %v644 = vunpack.c.l.b16 %v588
        %v645 = vunpack.c.l.b16 %v602
        %v646 = vunpack.c.l.b16 %v612
        %v647 = vpack.c.b16 %v616, %v615
        %v648 = vpack.c.b16 %v618, %v617
        %v649 = vpack.c.b16 %v620, %v619
        %v650 = vpack.c.b16 %v622, %v621
        %v651 = vpack.c.b16 %v624, %v623
        %v652 = vpack.c.b16 %v626, %v625
        %v653 = vpack.c.b16 %v628, %v627
        %v654 = vpack.c.b16 %v630, %v629
        %v655 = vpack.c.b16 %v632, %v631
        %v656 = vpack.c.b16 %v634, %v633
        %v657 = vpack.c.b16 %v636, %v635
        %v658 = vpack.c.b16 %v638, %v637
        %v659 = vpack.c.b16 %v640, %v639
        %v660 = vpack.c.b16 %v642, %v641
        %v661 = vpack.c.b16 %v644, %v643
        %v662 = vpack.c.b16 %v646, %v645
        %vm663 = vcmask 31744
        %v665 = vsel %vm663, %v647, 0
        %v668 = vsel %vm663, %v648, 0
        %v671 = vsel %vm663, %v649, 0
        %v674 = vsel %vm663, %v650, 0
        %v677 = vsel %vm663, %v651, 0
        %v680 = vsel %vm663, %v652, 0
        %v683 = vsel %vm663, %v653, 0
        %v686 = vsel %vm663, %v654, 0
        %v689 = vsel %vm663, %v655, 0
        %v692 = vsel %vm663, %v656, 0
        %v695 = vsel %vm663, %v657, 0
        %v698 = vsel %vm663, %v658, 0
        %v701 = vsel %vm663, %v659, 0
        %v704 = vsel %vm663, %v660, 0
        %v707 = vsel %vm663, %v661, 0
        %v710 = vsel %vm663, %v662, 0
        %vm712 = vcmask 1041408
        %v714 = vsel %vm712, %v614, 0
        %716 = vmatprep.subr.bf16.mxu0 0
        %717 = vmatpush1.bf16.msra.mxu0 0
        %718 = vmatprep.subr.bf16.mxu0 0
        %719 = vmatpush1.bf16.msra.mxu0 0
        %720 = vmatprep.subr.bf16.mxu0 0
        %721 = vmatpush1.bf16.msra.mxu0 0
        %722 = vmatprep.subr.bf16.mxu0 0
        %723 = vmatpush1.bf16.msra.mxu0 0
        %724 = vmatprep.subr.bf16.mxu0 0
        %725 = vmatpush1.bf16.msra.mxu0 0
        %726 = vmatprep.subr.bf16.mxu0 0
        %727 = vmatpush1.bf16.msra.mxu0 0
        %728 = vmatprep.subr.bf16.mxu0 0
        %729 = vmatpush1.bf16.msra.mxu0 0
        %730 = vmatprep.subr.bf16.mxu0 0
        %731 = vmatpush1.bf16.msra.mxu0 %v714
        %732 = vmatprep.subr.bf16.mxu0 0
        %733 = vmatpush2.bf16.msra.mxu0 0
        %734 = vmatprep.subr.bf16.mxu0 0
        %735 = vmatpush2.bf16.msra.mxu0 0
        %736 = vmatprep.subr.bf16.mxu0 0
        %737 = vmatpush2.bf16.msra.mxu0 0
        %738 = vmatprep.subr.bf16.mxu0 0
        %739 = vmatpush2.bf16.msra.mxu0 0
        %740 = vmatprep.subr.bf16.mxu0 0
        %741 = vmatpush2.bf16.msra.mxu0 0
        %742 = vmatprep.subr.bf16.mxu0 0
        %743 = vmatpush2.bf16.msra.mxu0 0
        %744 = vmatprep.subr.bf16.mxu0 0
        %745 = vmatpush2.bf16.msra.mxu0 0
        %746 = vmatprep.subr.bf16.mxu0 0
        %747 = vmatpush2.bf16.msra.mxu0 0
        %748 = vmatprep.mubr.bf16.mxu0 0
        %749 = vmatmul.mubr.bf16.gmra.mxu0 %v665
        %v750 = vpop.f32.mrf.mxu0
        %v751 = vadd.f32 0.0, %v750
        %v752 = vpop.f32.mrf.mxu0
        %v753 = vpop.f32.mrf.mxu0
        %v754 = vadd.f32 0.0, %v753
        %v755 = vpop.f32.mrf.mxu0
        %756 = vmatprep.mubr.bf16.mxu0 0
        %757 = vmatmul.mubr.bf16.gmra.mxu0 %v668
        %v758 = vpop.f32.mrf.mxu0
        %v759 = vadd.f32 0.0, %v758
        %v760 = vpop.f32.mrf.mxu0
        %v761 = vpop.f32.mrf.mxu0
        %v762 = vadd.f32 0.0, %v761
        %v763 = vpop.f32.mrf.mxu0
        %764 = vmatprep.mubr.bf16.mxu0 0
        %765 = vmatmul.mubr.bf16.gmra.mxu0 %v671
        %v766 = vpop.f32.mrf.mxu0
        %v767 = vadd.f32 0.0, %v766
        %v768 = vpop.f32.mrf.mxu0
        %v769 = vpop.f32.mrf.mxu0
        %v770 = vadd.f32 0.0, %v769
        %v771 = vpop.f32.mrf.mxu0
        %772 = vmatprep.mubr.bf16.mxu0 0
        %773 = vmatmul.mubr.bf16.gmra.mxu0 %v674
        %v774 = vpop.f32.mrf.mxu0
        %v775 = vadd.f32 0.0, %v774
        %v776 = vpop.f32.mrf.mxu0
        %v777 = vpop.f32.mrf.mxu0
        %v778 = vadd.f32 0.0, %v777
        %v779 = vpop.f32.mrf.mxu0
        %780 = vmatprep.mubr.bf16.mxu0 0
        %781 = vmatmul.mubr.bf16.gmra.mxu0 %v677
        %v782 = vpop.f32.mrf.mxu0
        %v783 = vadd.f32 0.0, %v782
        %v784 = vpop.f32.mrf.mxu0
        %v785 = vpop.f32.mrf.mxu0
        %v786 = vadd.f32 0.0, %v785
        %v787 = vpop.f32.mrf.mxu0
        %788 = vmatprep.mubr.bf16.mxu0 0
        %789 = vmatmul.mubr.bf16.gmra.mxu0 %v680
        %v790 = vpop.f32.mrf.mxu0
        %v791 = vadd.f32 0.0, %v790
        %v792 = vpop.f32.mrf.mxu0
        %v793 = vpop.f32.mrf.mxu0
        %v794 = vadd.f32 0.0, %v793
        %v795 = vpop.f32.mrf.mxu0
        %796 = vmatprep.mubr.bf16.mxu0 0
        %797 = vmatmul.mubr.bf16.gmra.mxu0 %v683
        %v798 = vpop.f32.mrf.mxu0
        %v799 = vadd.f32 0.0, %v798
        %v800 = vpop.f32.mrf.mxu0
        %v801 = vpop.f32.mrf.mxu0
        %v802 = vadd.f32 0.0, %v801
        %v803 = vpop.f32.mrf.mxu0
        %804 = vmatprep.mubr.bf16.mxu0 0
        %805 = vmatmul.mubr.bf16.gmra.mxu0 %v686
        %v806 = vpop.f32.mrf.mxu0
        %v807 = vadd.f32 0.0, %v806
        %v808 = vpop.f32.mrf.mxu0
        %v809 = vpop.f32.mrf.mxu0
        %v810 = vadd.f32 0.0, %v809
        %v811 = vpop.f32.mrf.mxu0
        %812 = vmatprep.mubr.bf16.mxu0 0
        %813 = vmatmul.mubr.bf16.gmra.mxu0 %v689
        %v814 = vpop.f32.mrf.mxu0
        %v815 = vadd.f32 0.0, %v814
        %v816 = vpop.f32.mrf.mxu0
        %v817 = vpop.f32.mrf.mxu0
        %v818 = vadd.f32 0.0, %v817
        %v819 = vpop.f32.mrf.mxu0
        %820 = vmatprep.mubr.bf16.mxu0 0
        %821 = vmatmul.mubr.bf16.gmra.mxu0 %v692
        %v822 = vpop.f32.mrf.mxu0
        %v823 = vadd.f32 0.0, %v822
        %v824 = vpop.f32.mrf.mxu0
        %v825 = vpop.f32.mrf.mxu0
        %v826 = vadd.f32 0.0, %v825
        %v827 = vpop.f32.mrf.mxu0
        %828 = vmatprep.mubr.bf16.mxu0 0
        %829 = vmatmul.mubr.bf16.gmra.mxu0 %v695
        %v830 = vpop.f32.mrf.mxu0
        %v831 = vadd.f32 0.0, %v830
        %v832 = vpop.f32.mrf.mxu0
        %v833 = vpop.f32.mrf.mxu0
        %v834 = vadd.f32 0.0, %v833
        %v835 = vpop.f32.mrf.mxu0
        %836 = vmatprep.mubr.bf16.mxu0 0
        %837 = vmatmul.mubr.bf16.gmra.mxu0 %v698
        %v838 = vpop.f32.mrf.mxu0
        %v839 = vadd.f32 0.0, %v838
        %v840 = vpop.f32.mrf.mxu0
        %v841 = vpop.f32.mrf.mxu0
        %v842 = vadd.f32 0.0, %v841
        %v843 = vpop.f32.mrf.mxu0
        %844 = vmatprep.mubr.bf16.mxu0 0
        %845 = vmatmul.mubr.bf16.gmra.mxu0 %v701
        %v846 = vpop.f32.mrf.mxu0
        %v847 = vadd.f32 0.0, %v846
        %v848 = vpop.f32.mrf.mxu0
        %v849 = vpop.f32.mrf.mxu0
        %v850 = vadd.f32 0.0, %v849
        %v851 = vpop.f32.mrf.mxu0
        %852 = vmatprep.mubr.bf16.mxu0 0
        %853 = vmatmul.mubr.bf16.gmra.mxu0 %v704
        %v854 = vpop.f32.mrf.mxu0
        %v855 = vadd.f32 0.0, %v854
        %v856 = vpop.f32.mrf.mxu0
        %v857 = vpop.f32.mrf.mxu0
        %v858 = vadd.f32 0.0, %v857
        %v859 = vpop.f32.mrf.mxu0
        %860 = vmatprep.mubr.bf16.mxu0 0
        %861 = vmatmul.mubr.bf16.gmra.mxu0 %v707
        %v862 = vpop.f32.mrf.mxu0
        %v863 = vadd.f32 0.0, %v862
        %v864 = vpop.f32.mrf.mxu0
        %v865 = vpop.f32.mrf.mxu0
        %v866 = vadd.f32 0.0, %v865
        %v867 = vpop.f32.mrf.mxu0
        %868 = vmatprep.mubr.bf16.mxu0 0
        %869 = vmatmul.mubr.bf16.gmra.mxu0 %v710
        %v870 = vpop.f32.mrf.mxu0
        %v871 = vadd.f32 0.0, %v870
        %v872 = vpop.f32.mrf.mxu0
        %v873 = vpop.f32.mrf.mxu0
        %v874 = vadd.f32 0.0, %v873
        %v875 = vpop.f32.mrf.mxu0
        %876 = vdwg.mxu0
        %v909 = vunpack.c.l.b16 %v171
        %v910 = vunpack.c.l.b16 %v172
        %v911 = vunpack.c.l.b16 %v174
        %v912 = vunpack.c.l.b16 %v175
        %v913 = vunpack.c.l.b16 %v177
        %v914 = vunpack.c.l.b16 %v178
        %v915 = vunpack.c.l.b16 %v180
        %v916 = vunpack.c.l.b16 %v181
        %v917 = vunpack.c.l.b16 %v183
        %v918 = vunpack.c.l.b16 %v184
        %v919 = vunpack.c.l.b16 %v186
        %v920 = vunpack.c.l.b16 %v187
        %v921 = vunpack.c.l.b16 %v189
        %v922 = vunpack.c.l.b16 %v190
        %v923 = vunpack.c.l.b16 %v192
        %v924 = vunpack.c.l.b16 %v193
        %v925 = vunpack.c.l.b16 %v195
        %v926 = vunpack.c.l.b16 %v196
        %v927 = vunpack.c.l.b16 %v198
        %v928 = vunpack.c.l.b16 %v199
        %v929 = vunpack.c.l.b16 %v201
        %v930 = vunpack.c.l.b16 %v202
        %v931 = vunpack.c.l.b16 %v204
        %v932 = vunpack.c.l.b16 %v205
        %v933 = vunpack.c.l.b16 %v207
        %v934 = vunpack.c.l.b16 %v208
        %v935 = vunpack.c.l.b16 %v210
        %v936 = vunpack.c.l.b16 %v211
        %v937 = vunpack.c.l.b16 %v213
        %v938 = vunpack.c.l.b16 %v214
        %v939 = vunpack.c.l.b16 %v216
        %v940 = vunpack.c.l.b16 %v217
        %v941 = vpack.c.b16 %v910, %v909
        %v942 = vpack.c.b16 %v912, %v911
        %v943 = vpack.c.b16 %v914, %v913
        %v944 = vpack.c.b16 %v916, %v915
        %v945 = vpack.c.b16 %v918, %v917
        %v946 = vpack.c.b16 %v920, %v919
        %v947 = vpack.c.b16 %v922, %v921
        %v948 = vpack.c.b16 %v924, %v923
        %v949 = vpack.c.b16 %v926, %v925
        %v950 = vpack.c.b16 %v928, %v927
        %v951 = vpack.c.b16 %v930, %v929
        %v952 = vpack.c.b16 %v932, %v931
        %v953 = vpack.c.b16 %v934, %v933
        %v954 = vpack.c.b16 %v936, %v935
        %v955 = vpack.c.b16 %v938, %v937
        %v956 = vpack.c.b16 %v940, %v939
        %v958 = vsel %vm663, %v941, 0
        %v961 = vsel %vm663, %v942, 0
        %v964 = vsel %vm663, %v943, 0
        %v967 = vsel %vm663, %v944, 0
        %v970 = vsel %vm663, %v945, 0
        %v973 = vsel %vm663, %v946, 0
        %v976 = vsel %vm663, %v947, 0
        %v979 = vsel %vm663, %v948, 0
        %v982 = vsel %vm663, %v949, 0
        %v985 = vsel %vm663, %v950, 0
        %v988 = vsel %vm663, %v951, 0
        %v991 = vsel %vm663, %v952, 0
        %v994 = vsel %vm663, %v953, 0
        %v997 = vsel %vm663, %v954, 0
        %v1000 = vsel %vm663, %v955, 0
        %v1003 = vsel %vm663, %v956, 0
        %v1006 = vsel %vm712, %v225, 0
        %1008 = vmatprep.subr.bf16.mxu0 0
        %1009 = vmatpush1.bf16.msra.mxu0 0
        %1010 = vmatprep.subr.bf16.mxu0 0
        %1011 = vmatpush1.bf16.msra.mxu0 0
        %1012 = vmatprep.subr.bf16.mxu0 0
        %1013 = vmatpush1.bf16.msra.mxu0 0
        %1014 = vmatprep.subr.bf16.mxu0 0
        %1015 = vmatpush1.bf16.msra.mxu0 0
        %1016 = vmatprep.subr.bf16.mxu0 0
        %1017 = vmatpush1.bf16.msra.mxu0 0
        %1018 = vmatprep.subr.bf16.mxu0 0
        %1019 = vmatpush1.bf16.msra.mxu0 0
        %1020 = vmatprep.subr.bf16.mxu0 0
        %1021 = vmatpush1.bf16.msra.mxu0 0
        %1022 = vmatprep.subr.bf16.mxu0 0
        %1023 = vmatpush1.bf16.msra.mxu0 %v1006
        %1024 = vmatprep.subr.bf16.mxu0 0
        %1025 = vmatpush2.bf16.msra.mxu0 0
        %1026 = vmatprep.subr.bf16.mxu0 0
        %1027 = vmatpush2.bf16.msra.mxu0 0
        %1028 = vmatprep.subr.bf16.mxu0 0
        %1029 = vmatpush2.bf16.msra.mxu0 0
        %1030 = vmatprep.subr.bf16.mxu0 0
        %1031 = vmatpush2.bf16.msra.mxu0 0
        %1032 = vmatprep.subr.bf16.mxu0 0
        %1033 = vmatpush2.bf16.msra.mxu0 0
        %1034 = vmatprep.subr.bf16.mxu0 0
        %1035 = vmatpush2.bf16.msra.mxu0 0
        %1036 = vmatprep.subr.bf16.mxu0 0
        %1037 = vmatpush2.bf16.msra.mxu0 0
        %1038 = vmatprep.subr.bf16.mxu0 0
        %1039 = vmatpush2.bf16.msra.mxu0 0
        %1040 = vmatprep.mubr.bf16.mxu0 0
        %1041 = vmatmul.mubr.bf16.gmra.mxu0 %v958
        %v1042 = vpop.f32.mrf.mxu0
        %v1043 = vadd.f32 %v751, %v1042
        %v1044 = vpop.f32.mrf.mxu0
        %v1045 = vpop.f32.mrf.mxu0
        %v1046 = vadd.f32 %v754, %v1045
        %v1047 = vpop.f32.mrf.mxu0
        %1048 = vmatprep.mubr.bf16.mxu0 0
        %1049 = vmatmul.mubr.bf16.gmra.mxu0 %v961
        %v1050 = vpop.f32.mrf.mxu0
        %v1051 = vadd.f32 %v759, %v1050
        %v1052 = vpop.f32.mrf.mxu0
        %v1053 = vpop.f32.mrf.mxu0
        %v1054 = vadd.f32 %v762, %v1053
        %v1055 = vpop.f32.mrf.mxu0
        %1056 = vmatprep.mubr.bf16.mxu0 0
        %1057 = vmatmul.mubr.bf16.gmra.mxu0 %v964
        %v1058 = vpop.f32.mrf.mxu0
        %v1059 = vadd.f32 %v767, %v1058
        %v1060 = vpop.f32.mrf.mxu0
        %v1061 = vpop.f32.mrf.mxu0
        %v1062 = vadd.f32 %v770, %v1061
        %v1063 = vpop.f32.mrf.mxu0
        %1064 = vmatprep.mubr.bf16.mxu0 0
        %1065 = vmatmul.mubr.bf16.gmra.mxu0 %v967
        %v1066 = vpop.f32.mrf.mxu0
        %v1067 = vadd.f32 %v775, %v1066
        %v1068 = vpop.f32.mrf.mxu0
        %v1069 = vpop.f32.mrf.mxu0
        %v1070 = vadd.f32 %v778, %v1069
        %v1071 = vpop.f32.mrf.mxu0
        %1072 = vmatprep.mubr.bf16.mxu0 0
        %1073 = vmatmul.mubr.bf16.gmra.mxu0 %v970
        %v1074 = vpop.f32.mrf.mxu0
        %v1075 = vadd.f32 %v783, %v1074
        %v1076 = vpop.f32.mrf.mxu0
        %v1077 = vpop.f32.mrf.mxu0
        %v1078 = vadd.f32 %v786, %v1077
        %v1079 = vpop.f32.mrf.mxu0
        %1080 = vmatprep.mubr.bf16.mxu0 0
        %1081 = vmatmul.mubr.bf16.gmra.mxu0 %v973
        %v1082 = vpop.f32.mrf.mxu0
        %v1083 = vadd.f32 %v791, %v1082
        %v1084 = vpop.f32.mrf.mxu0
        %v1085 = vpop.f32.mrf.mxu0
        %v1086 = vadd.f32 %v794, %v1085
        %v1087 = vpop.f32.mrf.mxu0
        %1088 = vmatprep.mubr.bf16.mxu0 0
        %1089 = vmatmul.mubr.bf16.gmra.mxu0 %v976
        %v1090 = vpop.f32.mrf.mxu0
        %v1091 = vadd.f32 %v799, %v1090
        %v1092 = vpop.f32.mrf.mxu0
        %v1093 = vpop.f32.mrf.mxu0
        %v1094 = vadd.f32 %v802, %v1093
        %v1095 = vpop.f32.mrf.mxu0
        %1096 = vmatprep.mubr.bf16.mxu0 0
        %1097 = vmatmul.mubr.bf16.gmra.mxu0 %v979
        %v1098 = vpop.f32.mrf.mxu0
        %v1099 = vadd.f32 %v807, %v1098
        %v1100 = vpop.f32.mrf.mxu0
        %v1101 = vpop.f32.mrf.mxu0
        %v1102 = vadd.f32 %v810, %v1101
        %v1103 = vpop.f32.mrf.mxu0
        %1104 = vmatprep.mubr.bf16.mxu0 0
        %1105 = vmatmul.mubr.bf16.gmra.mxu0 %v982
        %v1106 = vpop.f32.mrf.mxu0
        %v1107 = vadd.f32 %v815, %v1106
        %v1108 = vpop.f32.mrf.mxu0
        %v1109 = vpop.f32.mrf.mxu0
        %v1110 = vadd.f32 %v818, %v1109
        %v1111 = vpop.f32.mrf.mxu0
        %1112 = vmatprep.mubr.bf16.mxu0 0
        %1113 = vmatmul.mubr.bf16.gmra.mxu0 %v985
        %v1114 = vpop.f32.mrf.mxu0
        %v1115 = vadd.f32 %v823, %v1114
        %v1116 = vpop.f32.mrf.mxu0
        %v1117 = vpop.f32.mrf.mxu0
        %v1118 = vadd.f32 %v826, %v1117
        %v1119 = vpop.f32.mrf.mxu0
        %1120 = vmatprep.mubr.bf16.mxu0 0
        %1121 = vmatmul.mubr.bf16.gmra.mxu0 %v988
        %v1122 = vpop.f32.mrf.mxu0
        %v1123 = vadd.f32 %v831, %v1122
        %v1124 = vpop.f32.mrf.mxu0
        %v1125 = vpop.f32.mrf.mxu0
        %v1126 = vadd.f32 %v834, %v1125
        %v1127 = vpop.f32.mrf.mxu0
        %1128 = vmatprep.mubr.bf16.mxu0 0
        %1129 = vmatmul.mubr.bf16.gmra.mxu0 %v991
        %v1130 = vpop.f32.mrf.mxu0
        %v1131 = vadd.f32 %v839, %v1130
        %v1132 = vpop.f32.mrf.mxu0
        %v1133 = vpop.f32.mrf.mxu0
        %v1134 = vadd.f32 %v842, %v1133
        %v1135 = vpop.f32.mrf.mxu0
        %1136 = vmatprep.mubr.bf16.mxu0 0
        %1137 = vmatmul.mubr.bf16.gmra.mxu0 %v994
        %v1138 = vpop.f32.mrf.mxu0
        %v1139 = vadd.f32 %v847, %v1138
        %v1140 = vpop.f32.mrf.mxu0
        %v1141 = vpop.f32.mrf.mxu0
        %v1142 = vadd.f32 %v850, %v1141
        %v1143 = vpop.f32.mrf.mxu0
        %1144 = vmatprep.mubr.bf16.mxu0 0
        %1145 = vmatmul.mubr.bf16.gmra.mxu0 %v997
        %v1146 = vpop.f32.mrf.mxu0
        %v1147 = vadd.f32 %v855, %v1146
        %v1148 = vpop.f32.mrf.mxu0
        %v1149 = vpop.f32.mrf.mxu0
        %v1150 = vadd.f32 %v858, %v1149
        %v1151 = vpop.f32.mrf.mxu0
        %1152 = vmatprep.mubr.bf16.mxu0 0
        %1153 = vmatmul.mubr.bf16.gmra.mxu0 %v1000
        %v1154 = vpop.f32.mrf.mxu0
        %v1155 = vadd.f32 %v863, %v1154
        %v1156 = vpop.f32.mrf.mxu0
        %v1157 = vpop.f32.mrf.mxu0
        %v1158 = vadd.f32 %v866, %v1157
        %v1159 = vpop.f32.mrf.mxu0
        %1160 = vmatprep.mubr.bf16.mxu0 0
        %1161 = vmatmul.mubr.bf16.gmra.mxu0 %v1003
        %v1162 = vpop.f32.mrf.mxu0
        %v1163 = vadd.f32 %v871, %v1162
        %v1164 = vpop.f32.mrf.mxu0
        %v1165 = vpop.f32.mrf.mxu0
        %v1166 = vadd.f32 %v874, %v1165
        %v1167 = vpop.f32.mrf.mxu0
        %1168 = vdwg.mxu0
        %vm1185 = vcmask 1042432
        %vm1186 = vcmask 1046532
        %vm1187 = vmor %vm1185, %vm1186
        %v1188 = vrot.slane %v171, 5
        %v1189 = vrot.slane %v1188, 4
        %v1190 = vrot.slane %v172, 5
        %v1191 = vsel %vm1187, %v1189, %v1190
        %v1192 = vrot.slane %v1190, 4
        %v1193 = vrot.slane %v173, 5
        %v1194 = vsel %vm1187, %v1192, %v1193
        %v1195 = vrot.slane %v174, 5
        %v1196 = vrot.slane %v1195, 4
        %v1197 = vrot.slane %v175, 5
        %v1198 = vsel %vm1187, %v1196, %v1197
        %v1199 = vrot.slane %v1197, 4
        %v1200 = vrot.slane %v176, 5
        %v1201 = vsel %vm1187, %v1199, %v1200
        %v1202 = vrot.slane %v177, 5
        %v1203 = vrot.slane %v1202, 4
        %v1204 = vrot.slane %v178, 5
        %v1205 = vsel %vm1187, %v1203, %v1204
        %v1206 = vrot.slane %v1204, 4
        %v1207 = vrot.slane %v179, 5
        %v1208 = vsel %vm1187, %v1206, %v1207
        %v1209 = vrot.slane %v180, 5
        %v1210 = vrot.slane %v1209, 4
        %v1211 = vrot.slane %v181, 5
        %v1212 = vsel %vm1187, %v1210, %v1211
        %v1213 = vrot.slane %v1211, 4
        %v1214 = vrot.slane %v182, 5
        %v1215 = vsel %vm1187, %v1213, %v1214
        %v1216 = vrot.slane %v183, 5
        %v1217 = vrot.slane %v1216, 4
        %v1218 = vrot.slane %v184, 5
        %v1219 = vsel %vm1187, %v1217, %v1218
        %v1220 = vrot.slane %v1218, 4
        %v1221 = vrot.slane %v185, 5
        %v1222 = vsel %vm1187, %v1220, %v1221
        %v1223 = vrot.slane %v186, 5
        %v1224 = vrot.slane %v1223, 4
        %v1225 = vrot.slane %v187, 5
        %v1226 = vsel %vm1187, %v1224, %v1225
        %v1227 = vrot.slane %v1225, 4
        %v1228 = vrot.slane %v188, 5
        %v1229 = vsel %vm1187, %v1227, %v1228
        %v1230 = vrot.slane %v189, 5
        %v1231 = vrot.slane %v1230, 4
        %v1232 = vrot.slane %v190, 5
        %v1233 = vsel %vm1187, %v1231, %v1232
        %v1234 = vrot.slane %v1232, 4
        %v1235 = vrot.slane %v191, 5
        %v1236 = vsel %vm1187, %v1234, %v1235
        %v1237 = vrot.slane %v192, 5
        %v1238 = vrot.slane %v1237, 4
        %v1239 = vrot.slane %v193, 5
        %v1240 = vsel %vm1187, %v1238, %v1239
        %v1241 = vrot.slane %v1239, 4
        %v1242 = vrot.slane %v194, 5
        %v1243 = vsel %vm1187, %v1241, %v1242
        %v1244 = vrot.slane %v195, 5
        %v1245 = vrot.slane %v1244, 4
        %v1246 = vrot.slane %v196, 5
        %v1247 = vsel %vm1187, %v1245, %v1246
        %v1248 = vrot.slane %v1246, 4
        %v1249 = vrot.slane %v197, 5
        %v1250 = vsel %vm1187, %v1248, %v1249
        %v1251 = vrot.slane %v198, 5
        %v1252 = vrot.slane %v1251, 4
        %v1253 = vrot.slane %v199, 5
        %v1254 = vsel %vm1187, %v1252, %v1253
        %v1255 = vrot.slane %v1253, 4
        %v1256 = vrot.slane %v200, 5
        %v1257 = vsel %vm1187, %v1255, %v1256
        %v1258 = vrot.slane %v201, 5
        %v1259 = vrot.slane %v1258, 4
        %v1260 = vrot.slane %v202, 5
        %v1261 = vsel %vm1187, %v1259, %v1260
        %v1262 = vrot.slane %v1260, 4
        %v1263 = vrot.slane %v203, 5
        %v1264 = vsel %vm1187, %v1262, %v1263
        %v1265 = vrot.slane %v204, 5
        %v1266 = vrot.slane %v1265, 4
        %v1267 = vrot.slane %v205, 5
        %v1268 = vsel %vm1187, %v1266, %v1267
        %v1269 = vrot.slane %v1267, 4
        %v1270 = vrot.slane %v206, 5
        %v1271 = vsel %vm1187, %v1269, %v1270
        %v1272 = vrot.slane %v207, 5
        %v1273 = vrot.slane %v1272, 4
        %v1274 = vrot.slane %v208, 5
        %v1275 = vsel %vm1187, %v1273, %v1274
        %v1276 = vrot.slane %v1274, 4
        %v1277 = vrot.slane %v209, 5
        %v1278 = vsel %vm1187, %v1276, %v1277
        %v1279 = vrot.slane %v210, 5
        %v1280 = vrot.slane %v1279, 4
        %v1281 = vrot.slane %v211, 5
        %v1282 = vsel %vm1187, %v1280, %v1281
        %v1283 = vrot.slane %v1281, 4
        %v1284 = vrot.slane %v212, 5
        %v1285 = vsel %vm1187, %v1283, %v1284
        %v1286 = vrot.slane %v213, 5
        %v1287 = vrot.slane %v1286, 4
        %v1288 = vrot.slane %v214, 5
        %v1289 = vsel %vm1187, %v1287, %v1288
        %v1290 = vrot.slane %v1288, 4
        %v1291 = vrot.slane %v215, 5
        %v1292 = vsel %vm1187, %v1290, %v1291
        %v1293 = vrot.slane %v216, 5
        %v1294 = vrot.slane %v1293, 4
        %v1295 = vrot.slane %v217, 5
        %v1296 = vsel %vm1187, %v1294, %v1295
        %v1297 = vrot.slane %v1295, 4
        %v1298 = vrot.slane %v218, 5
        %v1299 = vsel %vm1187, %v1297, %v1298
        %s1300 = scalar_lea.vmem %s1, 4
        %v1301 = vld [vmem:[%s1300] sm:$0x3]
        %v1302 = vunpack.c.l.b16 %v1191
        %v1303 = vunpack.c.l.b16 %v1194
        %v1304 = vunpack.c.l.b16 %v1198
        %v1305 = vunpack.c.l.b16 %v1201
        %v1306 = vunpack.c.l.b16 %v1205
        %v1307 = vunpack.c.l.b16 %v1208
        %v1308 = vunpack.c.l.b16 %v1212
        %v1309 = vunpack.c.l.b16 %v1215
        %v1310 = vunpack.c.l.b16 %v1219
        %v1311 = vunpack.c.l.b16 %v1222
        %v1312 = vunpack.c.l.b16 %v1226
        %v1313 = vunpack.c.l.b16 %v1229
        %v1314 = vunpack.c.l.b16 %v1233
        %v1315 = vunpack.c.l.b16 %v1236
        %v1316 = vunpack.c.l.b16 %v1240
        %v1317 = vunpack.c.l.b16 %v1243
        %v1318 = vunpack.c.l.b16 %v1247
        %v1319 = vunpack.c.l.b16 %v1250
        %v1320 = vunpack.c.l.b16 %v1254
        %v1321 = vunpack.c.l.b16 %v1257
        %v1322 = vunpack.c.l.b16 %v1261
        %v1323 = vunpack.c.l.b16 %v1264
        %v1324 = vunpack.c.l.b16 %v1268
        %v1325 = vunpack.c.l.b16 %v1271
        %v1326 = vunpack.c.l.b16 %v1275
        %v1327 = vunpack.c.l.b16 %v1278
        %v1328 = vunpack.c.l.b16 %v1282
        %v1329 = vunpack.c.l.b16 %v1285
        %v1330 = vunpack.c.l.b16 %v1289
        %v1331 = vunpack.c.l.b16 %v1292
        %v1332 = vunpack.c.l.b16 %v1296
        %v1333 = vunpack.c.l.b16 %v1299
        %v1334 = vpack.c.b16 %v1303, %v1302
        %v1335 = vpack.c.b16 %v1305, %v1304
        %v1336 = vpack.c.b16 %v1307, %v1306
        %v1337 = vpack.c.b16 %v1309, %v1308
        %v1338 = vpack.c.b16 %v1311, %v1310
        %v1339 = vpack.c.b16 %v1313, %v1312
        %v1340 = vpack.c.b16 %v1315, %v1314
        %v1341 = vpack.c.b16 %v1317, %v1316
        %v1342 = vpack.c.b16 %v1319, %v1318
        %v1343 = vpack.c.b16 %v1321, %v1320
        %v1344 = vpack.c.b16 %v1323, %v1322
        %v1345 = vpack.c.b16 %v1325, %v1324
        %v1346 = vpack.c.b16 %v1327, %v1326
        %v1347 = vpack.c.b16 %v1329, %v1328
        %v1348 = vpack.c.b16 %v1331, %v1330
        %v1349 = vpack.c.b16 %v1333, %v1332
        %v1351 = vsel %vm663, %v1334, 0
        %v1354 = vsel %vm663, %v1335, 0
        %v1357 = vsel %vm663, %v1336, 0
        %v1360 = vsel %vm663, %v1337, 0
        %v1363 = vsel %vm663, %v1338, 0
        %v1366 = vsel %vm663, %v1339, 0
        %v1369 = vsel %vm663, %v1340, 0
        %v1372 = vsel %vm663, %v1341, 0
        %v1375 = vsel %vm663, %v1342, 0
        %v1378 = vsel %vm663, %v1343, 0
        %v1381 = vsel %vm663, %v1344, 0
        %v1384 = vsel %vm663, %v1345, 0
        %v1387 = vsel %vm663, %v1346, 0
        %v1390 = vsel %vm663, %v1347, 0
        %v1393 = vsel %vm663, %v1348, 0
        %v1396 = vsel %vm663, %v1349, 0
        %v1399 = vsel %vm712, %v1301, 0
        %1401 = vmatprep.subr.bf16.mxu0 0
        %1402 = vmatpush1.bf16.msra.mxu0 0
        %1403 = vmatprep.subr.bf16.mxu0 0
        %1404 = vmatpush1.bf16.msra.mxu0 0
        %1405 = vmatprep.subr.bf16.mxu0 0
        %1406 = vmatpush1.bf16.msra.mxu0 0
        %1407 = vmatprep.subr.bf16.mxu0 0
        %1408 = vmatpush1.bf16.msra.mxu0 0
        %1409 = vmatprep.subr.bf16.mxu0 0
        %1410 = vmatpush1.bf16.msra.mxu0 0
        %1411 = vmatprep.subr.bf16.mxu0 0
        %1412 = vmatpush1.bf16.msra.mxu0 0
        %1413 = vmatprep.subr.bf16.mxu0 0
        %1414 = vmatpush1.bf16.msra.mxu0 0
        %1415 = vmatprep.subr.bf16.mxu0 0
        %1416 = vmatpush1.bf16.msra.mxu0 %v1399
        %1417 = vmatprep.subr.bf16.mxu0 0
        %1418 = vmatpush2.bf16.msra.mxu0 0
        %1419 = vmatprep.subr.bf16.mxu0 0
        %1420 = vmatpush2.bf16.msra.mxu0 0
        %1421 = vmatprep.subr.bf16.mxu0 0
        %1422 = vmatpush2.bf16.msra.mxu0 0
        %1423 = vmatprep.subr.bf16.mxu0 0
        %1424 = vmatpush2.bf16.msra.mxu0 0
        %1425 = vmatprep.subr.bf16.mxu0 0
        %1426 = vmatpush2.bf16.msra.mxu0 0
        %1427 = vmatprep.subr.bf16.mxu0 0
        %1428 = vmatpush2.bf16.msra.mxu0 0
        %1429 = vmatprep.subr.bf16.mxu0 0
        %1430 = vmatpush2.bf16.msra.mxu0 0
        %1431 = vmatprep.subr.bf16.mxu0 0
        %1432 = vmatpush2.bf16.msra.mxu0 0
        %1433 = vmatprep.mubr.bf16.mxu0 0
        %1434 = vmatmul.mubr.bf16.gmra.mxu0 %v1351
        %v1435 = vpop.f32.mrf.mxu0
        %v1436 = vadd.f32 0.0, %v1435
        %v1437 = vpop.f32.mrf.mxu0
        %v1438 = vpop.f32.mrf.mxu0
        %v1439 = vadd.f32 0.0, %v1438
        %v1440 = vpop.f32.mrf.mxu0
        %1441 = vmatprep.mubr.bf16.mxu0 0
        %1442 = vmatmul.mubr.bf16.gmra.mxu0 %v1354
        %v1443 = vpop.f32.mrf.mxu0
        %v1444 = vadd.f32 0.0, %v1443
        %v1445 = vpop.f32.mrf.mxu0
        %v1446 = vpop.f32.mrf.mxu0
        %v1447 = vadd.f32 0.0, %v1446
        %v1448 = vpop.f32.mrf.mxu0
        %1449 = vmatprep.mubr.bf16.mxu0 0
        %1450 = vmatmul.mubr.bf16.gmra.mxu0 %v1357
        %v1451 = vpop.f32.mrf.mxu0
        %v1452 = vadd.f32 0.0, %v1451
        %v1453 = vpop.f32.mrf.mxu0
        %v1454 = vpop.f32.mrf.mxu0
        %v1455 = vadd.f32 0.0, %v1454
        %v1456 = vpop.f32.mrf.mxu0
        %1457 = vmatprep.mubr.bf16.mxu0 0
        %1458 = vmatmul.mubr.bf16.gmra.mxu0 %v1360
        %v1459 = vpop.f32.mrf.mxu0
        %v1460 = vadd.f32 0.0, %v1459
        %v1461 = vpop.f32.mrf.mxu0
        %v1462 = vpop.f32.mrf.mxu0
        %v1463 = vadd.f32 0.0, %v1462
        %v1464 = vpop.f32.mrf.mxu0
        %1465 = vmatprep.mubr.bf16.mxu0 0
        %1466 = vmatmul.mubr.bf16.gmra.mxu0 %v1363
        %v1467 = vpop.f32.mrf.mxu0
        %v1468 = vadd.f32 0.0, %v1467
        %v1469 = vpop.f32.mrf.mxu0
        %v1470 = vpop.f32.mrf.mxu0
        %v1471 = vadd.f32 0.0, %v1470
        %v1472 = vpop.f32.mrf.mxu0
        %1473 = vmatprep.mubr.bf16.mxu0 0
        %1474 = vmatmul.mubr.bf16.gmra.mxu0 %v1366
        %v1475 = vpop.f32.mrf.mxu0
        %v1476 = vadd.f32 0.0, %v1475
        %v1477 = vpop.f32.mrf.mxu0
        %v1478 = vpop.f32.mrf.mxu0
        %v1479 = vadd.f32 0.0, %v1478
        %v1480 = vpop.f32.mrf.mxu0
        %1481 = vmatprep.mubr.bf16.mxu0 0
        %1482 = vmatmul.mubr.bf16.gmra.mxu0 %v1369
        %v1483 = vpop.f32.mrf.mxu0
        %v1484 = vadd.f32 0.0, %v1483
        %v1485 = vpop.f32.mrf.mxu0
        %v1486 = vpop.f32.mrf.mxu0
        %v1487 = vadd.f32 0.0, %v1486
        %v1488 = vpop.f32.mrf.mxu0
        %1489 = vmatprep.mubr.bf16.mxu0 0
        %1490 = vmatmul.mubr.bf16.gmra.mxu0 %v1372
        %v1491 = vpop.f32.mrf.mxu0
        %v1492 = vadd.f32 0.0, %v1491
        %v1493 = vpop.f32.mrf.mxu0
        %v1494 = vpop.f32.mrf.mxu0
        %v1495 = vadd.f32 0.0, %v1494
        %v1496 = vpop.f32.mrf.mxu0
        %1497 = vmatprep.mubr.bf16.mxu0 0
        %1498 = vmatmul.mubr.bf16.gmra.mxu0 %v1375
        %v1499 = vpop.f32.mrf.mxu0
        %v1500 = vadd.f32 0.0, %v1499
        %v1501 = vpop.f32.mrf.mxu0
        %v1502 = vpop.f32.mrf.mxu0
        %v1503 = vadd.f32 0.0, %v1502
        %v1504 = vpop.f32.mrf.mxu0
        %1505 = vmatprep.mubr.bf16.mxu0 0
        %1506 = vmatmul.mubr.bf16.gmra.mxu0 %v1378
        %v1507 = vpop.f32.mrf.mxu0
        %v1508 = vadd.f32 0.0, %v1507
        %v1509 = vpop.f32.mrf.mxu0
        %v1510 = vpop.f32.mrf.mxu0
        %v1511 = vadd.f32 0.0, %v1510
        %v1512 = vpop.f32.mrf.mxu0
        %1513 = vmatprep.mubr.bf16.mxu0 0
        %1514 = vmatmul.mubr.bf16.gmra.mxu0 %v1381
        %v1515 = vpop.f32.mrf.mxu0
        %v1516 = vadd.f32 0.0, %v1515
        %v1517 = vpop.f32.mrf.mxu0
        %v1518 = vpop.f32.mrf.mxu0
        %v1519 = vadd.f32 0.0, %v1518
        %v1520 = vpop.f32.mrf.mxu0
        %1521 = vmatprep.mubr.bf16.mxu0 0
        %1522 = vmatmul.mubr.bf16.gmra.mxu0 %v1384
        %v1523 = vpop.f32.mrf.mxu0
        %v1524 = vadd.f32 0.0, %v1523
        %v1525 = vpop.f32.mrf.mxu0
        %v1526 = vpop.f32.mrf.mxu0
        %v1527 = vadd.f32 0.0, %v1526
        %v1528 = vpop.f32.mrf.mxu0
        %1529 = vmatprep.mubr.bf16.mxu0 0
        %1530 = vmatmul.mubr.bf16.gmra.mxu0 %v1387
        %v1531 = vpop.f32.mrf.mxu0
        %v1532 = vadd.f32 0.0, %v1531
        %v1533 = vpop.f32.mrf.mxu0
        %v1534 = vpop.f32.mrf.mxu0
        %v1535 = vadd.f32 0.0, %v1534
        %v1536 = vpop.f32.mrf.mxu0
        %1537 = vmatprep.mubr.bf16.mxu0 0
        %1538 = vmatmul.mubr.bf16.gmra.mxu0 %v1390
        %v1539 = vpop.f32.mrf.mxu0
        %v1540 = vadd.f32 0.0, %v1539
        %v1541 = vpop.f32.mrf.mxu0
        %v1542 = vpop.f32.mrf.mxu0
        %v1543 = vadd.f32 0.0, %v1542
        %v1544 = vpop.f32.mrf.mxu0
        %1545 = vmatprep.mubr.bf16.mxu0 0
        %1546 = vmatmul.mubr.bf16.gmra.mxu0 %v1393
        %v1547 = vpop.f32.mrf.mxu0
        %v1548 = vadd.f32 0.0, %v1547
        %v1549 = vpop.f32.mrf.mxu0
        %v1550 = vpop.f32.mrf.mxu0
        %v1551 = vadd.f32 0.0, %v1550
        %v1552 = vpop.f32.mrf.mxu0
        %1553 = vmatprep.mubr.bf16.mxu0 0
        %1554 = vmatmul.mubr.bf16.gmra.mxu0 %v1396
        %v1555 = vpop.f32.mrf.mxu0
        %v1556 = vadd.f32 0.0, %v1555
        %v1557 = vpop.f32.mrf.mxu0
        %v1558 = vpop.f32.mrf.mxu0
        %v1559 = vadd.f32 0.0, %v1558
        %v1560 = vpop.f32.mrf.mxu0
        %1561 = vdwg.mxu0
        %v1562 = vadd.f32 %v1043, %v1436
        %v1563 = vadd.f32 %v1046, %v1439
        %v1564 = vadd.f32 %v1051, %v1444
        %v1565 = vadd.f32 %v1054, %v1447
        %v1566 = vadd.f32 %v1059, %v1452
        %v1567 = vadd.f32 %v1062, %v1455
        %v1568 = vadd.f32 %v1067, %v1460
        %v1569 = vadd.f32 %v1070, %v1463
        %v1570 = vadd.f32 %v1075, %v1468
        %v1571 = vadd.f32 %v1078, %v1471
        %v1572 = vadd.f32 %v1083, %v1476
        %v1573 = vadd.f32 %v1086, %v1479
        %v1574 = vadd.f32 %v1091, %v1484
        %v1575 = vadd.f32 %v1094, %v1487
        %v1576 = vadd.f32 %v1099, %v1492
        %v1577 = vadd.f32 %v1102, %v1495
        %v1578 = vadd.f32 %v1107, %v1500
        %v1579 = vadd.f32 %v1110, %v1503
        %v1580 = vadd.f32 %v1115, %v1508
        %v1581 = vadd.f32 %v1118, %v1511
        %v1582 = vadd.f32 %v1123, %v1516
        %v1583 = vadd.f32 %v1126, %v1519
        %v1584 = vadd.f32 %v1131, %v1524
        %v1585 = vadd.f32 %v1134, %v1527
        %v1586 = vadd.f32 %v1139, %v1532
        %v1587 = vadd.f32 %v1142, %v1535
        %v1588 = vadd.f32 %v1147, %v1540
        %v1589 = vadd.f32 %v1150, %v1543
        %v1590 = vadd.f32 %v1155, %v1548
        %v1591 = vadd.f32 %v1158, %v1551
        %v1592 = vadd.f32 %v1163, %v1556
        %v1593 = vadd.f32 %v1166, %v1559
        %s1594 = scalar_lea.vmem %s1, 6
        %v1595 = vld [vmem:[%s1594] sm:$0x3]
        %v1598 = vunpack.c.l.b16 %v219
        %v1599 = vunpack.c.l.b16 %v220
        %v1600 = vpack.c.b16 %v1599, %v1598
        %v1602 = vsel %vm663, %v1600, 0
        %v1605 = vsel %vm712, %v1595, 0
        %1607 = vmatprep.subr.bf16.mxu0 0
        %1608 = vmatpush1.bf16.msra.mxu0 0
        %1609 = vmatprep.subr.bf16.mxu0 0
        %1610 = vmatpush1.bf16.msra.mxu0 0
        %1611 = vmatprep.subr.bf16.mxu0 0
        %1612 = vmatpush1.bf16.msra.mxu0 0
        %1613 = vmatprep.subr.bf16.mxu0 0
        %1614 = vmatpush1.bf16.msra.mxu0 0
        %1615 = vmatprep.subr.bf16.mxu0 0
        %1616 = vmatpush1.bf16.msra.mxu0 0
        %1617 = vmatprep.subr.bf16.mxu0 0
        %1618 = vmatpush1.bf16.msra.mxu0 0
        %1619 = vmatprep.subr.bf16.mxu0 0
        %1620 = vmatpush1.bf16.msra.mxu0 0
        %1621 = vmatprep.subr.bf16.mxu0 0
        %1622 = vmatpush1.bf16.msra.mxu0 %v1605
        %1623 = vmatprep.subr.bf16.mxu0 0
        %1624 = vmatpush2.bf16.msra.mxu0 0
        %1625 = vmatprep.subr.bf16.mxu0 0
        %1626 = vmatpush2.bf16.msra.mxu0 0
        %1627 = vmatprep.subr.bf16.mxu0 0
        %1628 = vmatpush2.bf16.msra.mxu0 0
        %1629 = vmatprep.subr.bf16.mxu0 0
        %1630 = vmatpush2.bf16.msra.mxu0 0
        %1631 = vmatprep.subr.bf16.mxu0 0
        %1632 = vmatpush2.bf16.msra.mxu0 0
        %1633 = vmatprep.subr.bf16.mxu0 0
        %1634 = vmatpush2.bf16.msra.mxu0 0
        %1635 = vmatprep.subr.bf16.mxu0 0
        %1636 = vmatpush2.bf16.msra.mxu0 0
        %1637 = vmatprep.subr.bf16.mxu0 0
        %1638 = vmatpush2.bf16.msra.mxu0 0
        %1639 = vmatprep.mubr.bf16.mxu0 0
        %1640 = vmatmul.mubr.bf16.gmra.mxu0 %v961
        %v1641 = vpop.f32.mrf.mxu0
        %v1642 = vadd.f32 0.0, %v1641
        %v1643 = vpop.f32.mrf.mxu0
        %v1644 = vpop.f32.mrf.mxu0
        %v1645 = vadd.f32 0.0, %v1644
        %v1646 = vpop.f32.mrf.mxu0
        %1647 = vmatprep.mubr.bf16.mxu0 0
        %1648 = vmatmul.mubr.bf16.gmra.mxu0 %v964
        %v1649 = vpop.f32.mrf.mxu0
        %v1650 = vadd.f32 0.0, %v1649
        %v1651 = vpop.f32.mrf.mxu0
        %v1652 = vpop.f32.mrf.mxu0
        %v1653 = vadd.f32 0.0, %v1652
        %v1654 = vpop.f32.mrf.mxu0
        %1655 = vmatprep.mubr.bf16.mxu0 0
        %1656 = vmatmul.mubr.bf16.gmra.mxu0 %v967
        %v1657 = vpop.f32.mrf.mxu0
        %v1658 = vadd.f32 0.0, %v1657
        %v1659 = vpop.f32.mrf.mxu0
        %v1660 = vpop.f32.mrf.mxu0
        %v1661 = vadd.f32 0.0, %v1660
        %v1662 = vpop.f32.mrf.mxu0
        %1663 = vmatprep.mubr.bf16.mxu0 0
        %1664 = vmatmul.mubr.bf16.gmra.mxu0 %v970
        %v1665 = vpop.f32.mrf.mxu0
        %v1666 = vadd.f32 0.0, %v1665
        %v1667 = vpop.f32.mrf.mxu0
        %v1668 = vpop.f32.mrf.mxu0
        %v1669 = vadd.f32 0.0, %v1668
        %v1670 = vpop.f32.mrf.mxu0
        %1671 = vmatprep.mubr.bf16.mxu0 0
        %1672 = vmatmul.mubr.bf16.gmra.mxu0 %v973
        %v1673 = vpop.f32.mrf.mxu0
        %v1674 = vadd.f32 0.0, %v1673
        %v1675 = vpop.f32.mrf.mxu0
        %v1676 = vpop.f32.mrf.mxu0
        %v1677 = vadd.f32 0.0, %v1676
        %v1678 = vpop.f32.mrf.mxu0
        %1679 = vmatprep.mubr.bf16.mxu0 0
        %1680 = vmatmul.mubr.bf16.gmra.mxu0 %v976
        %v1681 = vpop.f32.mrf.mxu0
        %v1682 = vadd.f32 0.0, %v1681
        %v1683 = vpop.f32.mrf.mxu0
        %v1684 = vpop.f32.mrf.mxu0
        %v1685 = vadd.f32 0.0, %v1684
        %v1686 = vpop.f32.mrf.mxu0
        %1687 = vmatprep.mubr.bf16.mxu0 0
        %1688 = vmatmul.mubr.bf16.gmra.mxu0 %v979
        %v1689 = vpop.f32.mrf.mxu0
        %v1690 = vadd.f32 0.0, %v1689
        %v1691 = vpop.f32.mrf.mxu0
        %v1692 = vpop.f32.mrf.mxu0
        %v1693 = vadd.f32 0.0, %v1692
        %v1694 = vpop.f32.mrf.mxu0
        %1695 = vmatprep.mubr.bf16.mxu0 0
        %1696 = vmatmul.mubr.bf16.gmra.mxu0 %v982
        %v1697 = vpop.f32.mrf.mxu0
        %v1698 = vadd.f32 0.0, %v1697
        %v1699 = vpop.f32.mrf.mxu0
        %v1700 = vpop.f32.mrf.mxu0
        %v1701 = vadd.f32 0.0, %v1700
        %v1702 = vpop.f32.mrf.mxu0
        %1703 = vmatprep.mubr.bf16.mxu0 0
        %1704 = vmatmul.mubr.bf16.gmra.mxu0 %v985
        %v1705 = vpop.f32.mrf.mxu0
        %v1706 = vadd.f32 0.0, %v1705
        %v1707 = vpop.f32.mrf.mxu0
        %v1708 = vpop.f32.mrf.mxu0
        %v1709 = vadd.f32 0.0, %v1708
        %v1710 = vpop.f32.mrf.mxu0
        %1711 = vmatprep.mubr.bf16.mxu0 0
        %1712 = vmatmul.mubr.bf16.gmra.mxu0 %v988
        %v1713 = vpop.f32.mrf.mxu0
        %v1714 = vadd.f32 0.0, %v1713
        %v1715 = vpop.f32.mrf.mxu0
        %v1716 = vpop.f32.mrf.mxu0
        %v1717 = vadd.f32 0.0, %v1716
        %v1718 = vpop.f32.mrf.mxu0
        %1719 = vmatprep.mubr.bf16.mxu0 0
        %1720 = vmatmul.mubr.bf16.gmra.mxu0 %v991
        %v1721 = vpop.f32.mrf.mxu0
        %v1722 = vadd.f32 0.0, %v1721
        %v1723 = vpop.f32.mrf.mxu0
        %v1724 = vpop.f32.mrf.mxu0
        %v1725 = vadd.f32 0.0, %v1724
        %v1726 = vpop.f32.mrf.mxu0
        %1727 = vmatprep.mubr.bf16.mxu0 0
        %1728 = vmatmul.mubr.bf16.gmra.mxu0 %v994
        %v1729 = vpop.f32.mrf.mxu0
        %v1730 = vadd.f32 0.0, %v1729
        %v1731 = vpop.f32.mrf.mxu0
        %v1732 = vpop.f32.mrf.mxu0
        %v1733 = vadd.f32 0.0, %v1732
        %v1734 = vpop.f32.mrf.mxu0
        %1735 = vmatprep.mubr.bf16.mxu0 0
        %1736 = vmatmul.mubr.bf16.gmra.mxu0 %v997
        %v1737 = vpop.f32.mrf.mxu0
        %v1738 = vadd.f32 0.0, %v1737
        %v1739 = vpop.f32.mrf.mxu0
        %v1740 = vpop.f32.mrf.mxu0
        %v1741 = vadd.f32 0.0, %v1740
        %v1742 = vpop.f32.mrf.mxu0
        %1743 = vmatprep.mubr.bf16.mxu0 0
        %1744 = vmatmul.mubr.bf16.gmra.mxu0 %v1000
        %v1745 = vpop.f32.mrf.mxu0
        %v1746 = vadd.f32 0.0, %v1745
        %v1747 = vpop.f32.mrf.mxu0
        %v1748 = vpop.f32.mrf.mxu0
        %v1749 = vadd.f32 0.0, %v1748
        %v1750 = vpop.f32.mrf.mxu0
        %1751 = vmatprep.mubr.bf16.mxu0 0
        %1752 = vmatmul.mubr.bf16.gmra.mxu0 %v1003
        %v1753 = vpop.f32.mrf.mxu0
        %v1754 = vadd.f32 0.0, %v1753
        %v1755 = vpop.f32.mrf.mxu0
        %v1756 = vpop.f32.mrf.mxu0
        %v1757 = vadd.f32 0.0, %v1756
        %v1758 = vpop.f32.mrf.mxu0
        %1759 = vmatprep.mubr.bf16.mxu0 0
        %1760 = vmatmul.mubr.bf16.gmra.mxu0 %v1602
        %v1761 = vpop.f32.mrf.mxu0
        %v1762 = vadd.f32 0.0, %v1761
        %v1763 = vpop.f32.mrf.mxu0
        %v1764 = vpop.f32.mrf.mxu0
        %v1765 = vadd.f32 0.0, %v1764
        %v1766 = vpop.f32.mrf.mxu0
        %1767 = vdwg.mxu0
        %v1768 = vadd.f32 %v1562, %v1642
        %v1769 = vadd.f32 %v1563, %v1645
        %v1770 = vadd.f32 %v1564, %v1650
        %v1771 = vadd.f32 %v1565, %v1653
        %v1772 = vadd.f32 %v1566, %v1658
        %v1773 = vadd.f32 %v1567, %v1661
        %v1774 = vadd.f32 %v1568, %v1666
        %v1775 = vadd.f32 %v1569, %v1669
        %v1776 = vadd.f32 %v1570, %v1674
        %v1777 = vadd.f32 %v1571, %v1677
        %v1778 = vadd.f32 %v1572, %v1682
        %v1779 = vadd.f32 %v1573, %v1685
        %v1780 = vadd.f32 %v1574, %v1690
        %v1781 = vadd.f32 %v1575, %v1693
        %v1782 = vadd.f32 %v1576, %v1698
        %v1783 = vadd.f32 %v1577, %v1701
        %v1784 = vadd.f32 %v1578, %v1706
        %v1785 = vadd.f32 %v1579, %v1709
        %v1786 = vadd.f32 %v1580, %v1714
        %v1787 = vadd.f32 %v1581, %v1717
        %v1788 = vadd.f32 %v1582, %v1722
        %v1789 = vadd.f32 %v1583, %v1725
        %v1790 = vadd.f32 %v1584, %v1730
        %v1791 = vadd.f32 %v1585, %v1733
        %v1792 = vadd.f32 %v1586, %v1738
        %v1793 = vadd.f32 %v1587, %v1741
        %v1794 = vadd.f32 %v1588, %v1746
        %v1795 = vadd.f32 %v1589, %v1749
        %v1796 = vadd.f32 %v1590, %v1754
        %v1797 = vadd.f32 %v1591, %v1757
        %v1798 = vadd.f32 %v1592, %v1762
        %v1799 = vadd.f32 %v1593, %v1765
        %v1801 = vshrl.u32 %v219, 16
        %v1803 = vrot.slane %v1801, 4
        %v1804 = vshll.u32 %v219, 16
        %v1806 = vrot.slane %v1804, 5
        %v1807 = vor.u32 %v1803, %v1806
        %v1808 = vrot.slane %v1807, 4
        %v1810 = vshll.u32 %v220, 16
        %v1812 = vrot.slane %v1810, 5
        %v1813 = vsel %vm228, %v1808, %v1812
        %v1814 = vshrl.u32 %v220, 16
        %v1816 = vrot.slane %v1814, 4
        %v1817 = vor.u32 %v1816, %v1812
        %v1818 = vrot.slane %v1817, 4
        %v1820 = vshll.u32 %v221, 16
        %v1822 = vrot.slane %v1820, 5
        %v1823 = vsel %vm228, %v1818, %v1822
        %s1824 = scalar_lea.vmem %s1, 8
        %v1825 = vld [vmem:[%s1824] sm:$0x3]
        %v1826 = vunpack.c.l.b16 %v1813
        %v1827 = vunpack.c.l.b16 %v1823
        %v1828 = vpack.c.b16 %v1827, %v1826
        %v1830 = vsel %vm663, %v1828, 0
        %v1833 = vsel %vm712, %v1825, 0
        %1835 = vmatprep.subr.bf16.mxu0 0
        %1836 = vmatpush1.bf16.msra.mxu0 0
        %1837 = vmatprep.subr.bf16.mxu0 0
        %1838 = vmatpush1.bf16.msra.mxu0 0
        %1839 = vmatprep.subr.bf16.mxu0 0
        %1840 = vmatpush1.bf16.msra.mxu0 0
        %1841 = vmatprep.subr.bf16.mxu0 0
        %1842 = vmatpush1.bf16.msra.mxu0 0
        %1843 = vmatprep.subr.bf16.mxu0 0
        %1844 = vmatpush1.bf16.msra.mxu0 0
        %1845 = vmatprep.subr.bf16.mxu0 0
        %1846 = vmatpush1.bf16.msra.mxu0 0
        %1847 = vmatprep.subr.bf16.mxu0 0
        %1848 = vmatpush1.bf16.msra.mxu0 0
        %1849 = vmatprep.subr.bf16.mxu0 0
        %1850 = vmatpush1.bf16.msra.mxu0 %v1833
        %1851 = vmatprep.subr.bf16.mxu0 0
        %1852 = vmatpush2.bf16.msra.mxu0 0
        %1853 = vmatprep.subr.bf16.mxu0 0
        %1854 = vmatpush2.bf16.msra.mxu0 0
        %1855 = vmatprep.subr.bf16.mxu0 0
        %1856 = vmatpush2.bf16.msra.mxu0 0
        %1857 = vmatprep.subr.bf16.mxu0 0
        %1858 = vmatpush2.bf16.msra.mxu0 0
        %1859 = vmatprep.subr.bf16.mxu0 0
        %1860 = vmatpush2.bf16.msra.mxu0 0
        %1861 = vmatprep.subr.bf16.mxu0 0
        %1862 = vmatpush2.bf16.msra.mxu0 0
        %1863 = vmatprep.subr.bf16.mxu0 0
        %1864 = vmatpush2.bf16.msra.mxu0 0
        %1865 = vmatprep.subr.bf16.mxu0 0
        %1866 = vmatpush2.bf16.msra.mxu0 0
        %1867 = vmatprep.mubr.bf16.mxu0 0
        %1868 = vmatmul.mubr.bf16.gmra.mxu0 %v668
        %v1869 = vpop.f32.mrf.mxu0
        %v1870 = vadd.f32 0.0, %v1869
        %v1871 = vpop.f32.mrf.mxu0
        %v1872 = vpop.f32.mrf.mxu0
        %v1873 = vadd.f32 0.0, %v1872
        %v1874 = vpop.f32.mrf.mxu0
        %1875 = vmatprep.mubr.bf16.mxu0 0
        %1876 = vmatmul.mubr.bf16.gmra.mxu0 %v671
        %v1877 = vpop.f32.mrf.mxu0
        %v1878 = vadd.f32 0.0, %v1877
        %v1879 = vpop.f32.mrf.mxu0
        %v1880 = vpop.f32.mrf.mxu0
        %v1881 = vadd.f32 0.0, %v1880
        %v1882 = vpop.f32.mrf.mxu0
        %1883 = vmatprep.mubr.bf16.mxu0 0
        %1884 = vmatmul.mubr.bf16.gmra.mxu0 %v674
        %v1885 = vpop.f32.mrf.mxu0
        %v1886 = vadd.f32 0.0, %v1885
        %v1887 = vpop.f32.mrf.mxu0
        %v1888 = vpop.f32.mrf.mxu0
        %v1889 = vadd.f32 0.0, %v1888
        %v1890 = vpop.f32.mrf.mxu0
        %1891 = vmatprep.mubr.bf16.mxu0 0
        %1892 = vmatmul.mubr.bf16.gmra.mxu0 %v677
        %v1893 = vpop.f32.mrf.mxu0
        %v1894 = vadd.f32 0.0, %v1893
        %v1895 = vpop.f32.mrf.mxu0
        %v1896 = vpop.f32.mrf.mxu0
        %v1897 = vadd.f32 0.0, %v1896
        %v1898 = vpop.f32.mrf.mxu0
        %1899 = vmatprep.mubr.bf16.mxu0 0
        %1900 = vmatmul.mubr.bf16.gmra.mxu0 %v680
        %v1901 = vpop.f32.mrf.mxu0
        %v1902 = vadd.f32 0.0, %v1901
        %v1903 = vpop.f32.mrf.mxu0
        %v1904 = vpop.f32.mrf.mxu0
        %v1905 = vadd.f32 0.0, %v1904
        %v1906 = vpop.f32.mrf.mxu0
        %1907 = vmatprep.mubr.bf16.mxu0 0
        %1908 = vmatmul.mubr.bf16.gmra.mxu0 %v683
        %v1909 = vpop.f32.mrf.mxu0
        %v1910 = vadd.f32 0.0, %v1909
        %v1911 = vpop.f32.mrf.mxu0
        %v1912 = vpop.f32.mrf.mxu0
        %v1913 = vadd.f32 0.0, %v1912
        %v1914 = vpop.f32.mrf.mxu0
        %1915 = vmatprep.mubr.bf16.mxu0 0
        %1916 = vmatmul.mubr.bf16.gmra.mxu0 %v686
        %v1917 = vpop.f32.mrf.mxu0
        %v1918 = vadd.f32 0.0, %v1917
        %v1919 = vpop.f32.mrf.mxu0
        %v1920 = vpop.f32.mrf.mxu0
        %v1921 = vadd.f32 0.0, %v1920
        %v1922 = vpop.f32.mrf.mxu0
        %1923 = vmatprep.mubr.bf16.mxu0 0
        %1924 = vmatmul.mubr.bf16.gmra.mxu0 %v689
        %v1925 = vpop.f32.mrf.mxu0
        %v1926 = vadd.f32 0.0, %v1925
        %v1927 = vpop.f32.mrf.mxu0
        %v1928 = vpop.f32.mrf.mxu0
        %v1929 = vadd.f32 0.0, %v1928
        %v1930 = vpop.f32.mrf.mxu0
        %1931 = vmatprep.mubr.bf16.mxu0 0
        %1932 = vmatmul.mubr.bf16.gmra.mxu0 %v692
        %v1933 = vpop.f32.mrf.mxu0
        %v1934 = vadd.f32 0.0, %v1933
        %v1935 = vpop.f32.mrf.mxu0
        %v1936 = vpop.f32.mrf.mxu0
        %v1937 = vadd.f32 0.0, %v1936
        %v1938 = vpop.f32.mrf.mxu0
        %1939 = vmatprep.mubr.bf16.mxu0 0
        %1940 = vmatmul.mubr.bf16.gmra.mxu0 %v695
        %v1941 = vpop.f32.mrf.mxu0
        %v1942 = vadd.f32 0.0, %v1941
        %v1943 = vpop.f32.mrf.mxu0
        %v1944 = vpop.f32.mrf.mxu0
        %v1945 = vadd.f32 0.0, %v1944
        %v1946 = vpop.f32.mrf.mxu0
        %1947 = vmatprep.mubr.bf16.mxu0 0
        %1948 = vmatmul.mubr.bf16.gmra.mxu0 %v698
        %v1949 = vpop.f32.mrf.mxu0
        %v1950 = vadd.f32 0.0, %v1949
        %v1951 = vpop.f32.mrf.mxu0
        %v1952 = vpop.f32.mrf.mxu0
        %v1953 = vadd.f32 0.0, %v1952
        %v1954 = vpop.f32.mrf.mxu0
        %1955 = vmatprep.mubr.bf16.mxu0 0
        %1956 = vmatmul.mubr.bf16.gmra.mxu0 %v701
        %v1957 = vpop.f32.mrf.mxu0
        %v1958 = vadd.f32 0.0, %v1957
        %v1959 = vpop.f32.mrf.mxu0
        %v1960 = vpop.f32.mrf.mxu0
        %v1961 = vadd.f32 0.0, %v1960
        %v1962 = vpop.f32.mrf.mxu0
        %1963 = vmatprep.mubr.bf16.mxu0 0
        %1964 = vmatmul.mubr.bf16.gmra.mxu0 %v704
        %v1965 = vpop.f32.mrf.mxu0
        %v1966 = vadd.f32 0.0, %v1965
        %v1967 = vpop.f32.mrf.mxu0
        %v1968 = vpop.f32.mrf.mxu0
        %v1969 = vadd.f32 0.0, %v1968
        %v1970 = vpop.f32.mrf.mxu0
        %1971 = vmatprep.mubr.bf16.mxu0 0
        %1972 = vmatmul.mubr.bf16.gmra.mxu0 %v707
        %v1973 = vpop.f32.mrf.mxu0
        %v1974 = vadd.f32 0.0, %v1973
        %v1975 = vpop.f32.mrf.mxu0
        %v1976 = vpop.f32.mrf.mxu0
        %v1977 = vadd.f32 0.0, %v1976
        %v1978 = vpop.f32.mrf.mxu0
        %1979 = vmatprep.mubr.bf16.mxu0 0
        %1980 = vmatmul.mubr.bf16.gmra.mxu0 %v710
        %v1981 = vpop.f32.mrf.mxu0
        %v1982 = vadd.f32 0.0, %v1981
        %v1983 = vpop.f32.mrf.mxu0
        %v1984 = vpop.f32.mrf.mxu0
        %v1985 = vadd.f32 0.0, %v1984
        %v1986 = vpop.f32.mrf.mxu0
        %1987 = vmatprep.mubr.bf16.mxu0 0
        %1988 = vmatmul.mubr.bf16.gmra.mxu0 %v1830
        %v1989 = vpop.f32.mrf.mxu0
        %v1990 = vadd.f32 0.0, %v1989
        %v1991 = vpop.f32.mrf.mxu0
        %v1992 = vpop.f32.mrf.mxu0
        %v1993 = vadd.f32 0.0, %v1992
        %v1994 = vpop.f32.mrf.mxu0
        %1995 = vdwg.mxu0
        %v1996 = vadd.f32 %v1768, %v1870
        %v1997 = vadd.f32 %v1769, %v1873
        %v1998 = vadd.f32 %v1770, %v1878
        %v1999 = vadd.f32 %v1771, %v1881
        %v2000 = vadd.f32 %v1772, %v1886
        %v2001 = vadd.f32 %v1773, %v1889
        %v2002 = vadd.f32 %v1774, %v1894
        %v2003 = vadd.f32 %v1775, %v1897
        %v2004 = vadd.f32 %v1776, %v1902
        %v2005 = vadd.f32 %v1777, %v1905
        %v2006 = vadd.f32 %v1778, %v1910
        %v2007 = vadd.f32 %v1779, %v1913
        %v2008 = vadd.f32 %v1780, %v1918
        %v2009 = vadd.f32 %v1781, %v1921
        %v2010 = vadd.f32 %v1782, %v1926
        %v2011 = vadd.f32 %v1783, %v1929
        %v2012 = vadd.f32 %v1784, %v1934
        %v2013 = vadd.f32 %v1785, %v1937
        %v2014 = vadd.f32 %v1786, %v1942
        %v2015 = vadd.f32 %v1787, %v1945
        %v2016 = vadd.f32 %v1788, %v1950
        %v2017 = vadd.f32 %v1789, %v1953
        %v2018 = vadd.f32 %v1790, %v1958
        %v2019 = vadd.f32 %v1791, %v1961
        %v2020 = vadd.f32 %v1792, %v1966
        %v2021 = vadd.f32 %v1793, %v1969
        %v2022 = vadd.f32 %v1794, %v1974
        %v2023 = vadd.f32 %v1795, %v1977
        %v2024 = vadd.f32 %v1796, %v1982
        %v2025 = vadd.f32 %v1797, %v1985
        %v2026 = vadd.f32 %v1798, %v1990
        %v2027 = vadd.f32 %v1799, %v1993
        %v2029 = vrot.slane %v219, 5
        %v2030 = vrot.slane %v2029, 4
        %v2031 = vrot.slane %v220, 5
        %v2032 = vsel %vm1187, %v2030, %v2031
        %v2033 = vrot.slane %v2031, 4
        %v2034 = vrot.slane %v221, 5
        %v2035 = vsel %vm1187, %v2033, %v2034
        %s2036 = scalar_lea.vmem %s1, 10
        %v2037 = vld [vmem:[%s2036] sm:$0x3]
        %v2038 = vunpack.c.l.b16 %v2032
        %v2039 = vunpack.c.l.b16 %v2035
        %v2040 = vpack.c.b16 %v2039, %v2038
        %v2042 = vsel %vm663, %v2040, 0
        %v2045 = vsel %vm712, %v2037, 0
        %2047 = vmatprep.subr.bf16.mxu0 0
        %2048 = vmatpush1.bf16.msra.mxu0 0
        %2049 = vmatprep.subr.bf16.mxu0 0
        %2050 = vmatpush1.bf16.msra.mxu0 0
        %2051 = vmatprep.subr.bf16.mxu0 0
        %2052 = vmatpush1.bf16.msra.mxu0 0
        %2053 = vmatprep.subr.bf16.mxu0 0
        %2054 = vmatpush1.bf16.msra.mxu0 0
        %2055 = vmatprep.subr.bf16.mxu0 0
        %2056 = vmatpush1.bf16.msra.mxu0 0
        %2057 = vmatprep.subr.bf16.mxu0 0
        %2058 = vmatpush1.bf16.msra.mxu0 0
        %2059 = vmatprep.subr.bf16.mxu0 0
        %2060 = vmatpush1.bf16.msra.mxu0 0
        %2061 = vmatprep.subr.bf16.mxu0 0
        %2062 = vmatpush1.bf16.msra.mxu0 %v2045
        %2063 = vmatprep.subr.bf16.mxu0 0
        %2064 = vmatpush2.bf16.msra.mxu0 0
        %2065 = vmatprep.subr.bf16.mxu0 0
        %2066 = vmatpush2.bf16.msra.mxu0 0
        %2067 = vmatprep.subr.bf16.mxu0 0
        %2068 = vmatpush2.bf16.msra.mxu0 0
        %2069 = vmatprep.subr.bf16.mxu0 0
        %2070 = vmatpush2.bf16.msra.mxu0 0
        %2071 = vmatprep.subr.bf16.mxu0 0
        %2072 = vmatpush2.bf16.msra.mxu0 0
        %2073 = vmatprep.subr.bf16.mxu0 0
        %2074 = vmatpush2.bf16.msra.mxu0 0
        %2075 = vmatprep.subr.bf16.mxu0 0
        %2076 = vmatpush2.bf16.msra.mxu0 0
        %2077 = vmatprep.subr.bf16.mxu0 0
        %2078 = vmatpush2.bf16.msra.mxu0 0
        %2079 = vmatprep.mubr.bf16.mxu0 0
        %2080 = vmatmul.mubr.bf16.gmra.mxu0 %v1354
        %v2081 = vpop.f32.mrf.mxu0
        %v2082 = vadd.f32 0.0, %v2081
        %v2083 = vpop.f32.mrf.mxu0
        %v2084 = vpop.f32.mrf.mxu0
        %v2085 = vadd.f32 0.0, %v2084
        %v2086 = vpop.f32.mrf.mxu0
        %2087 = vmatprep.mubr.bf16.mxu0 0
        %2088 = vmatmul.mubr.bf16.gmra.mxu0 %v1357
        %v2089 = vpop.f32.mrf.mxu0
        %v2090 = vadd.f32 0.0, %v2089
        %v2091 = vpop.f32.mrf.mxu0
        %v2092 = vpop.f32.mrf.mxu0
        %v2093 = vadd.f32 0.0, %v2092
        %v2094 = vpop.f32.mrf.mxu0
        %2095 = vmatprep.mubr.bf16.mxu0 0
        %2096 = vmatmul.mubr.bf16.gmra.mxu0 %v1360
        %v2097 = vpop.f32.mrf.mxu0
        %v2098 = vadd.f32 0.0, %v2097
        %v2099 = vpop.f32.mrf.mxu0
        %v2100 = vpop.f32.mrf.mxu0
        %v2101 = vadd.f32 0.0, %v2100
        %v2102 = vpop.f32.mrf.mxu0
        %2103 = vmatprep.mubr.bf16.mxu0 0
        %2104 = vmatmul.mubr.bf16.gmra.mxu0 %v1363
        %v2105 = vpop.f32.mrf.mxu0
        %v2106 = vadd.f32 0.0, %v2105
        %v2107 = vpop.f32.mrf.mxu0
        %v2108 = vpop.f32.mrf.mxu0
        %v2109 = vadd.f32 0.0, %v2108
        %v2110 = vpop.f32.mrf.mxu0
        %2111 = vmatprep.mubr.bf16.mxu0 0
        %2112 = vmatmul.mubr.bf16.gmra.mxu0 %v1366
        %v2113 = vpop.f32.mrf.mxu0
        %v2114 = vadd.f32 0.0, %v2113
        %v2115 = vpop.f32.mrf.mxu0
        %v2116 = vpop.f32.mrf.mxu0
        %v2117 = vadd.f32 0.0, %v2116
        %v2118 = vpop.f32.mrf.mxu0
        %2119 = vmatprep.mubr.bf16.mxu0 0
        %2120 = vmatmul.mubr.bf16.gmra.mxu0 %v1369
        %v2121 = vpop.f32.mrf.mxu0
        %v2122 = vadd.f32 0.0, %v2121
        %v2123 = vpop.f32.mrf.mxu0
        %v2124 = vpop.f32.mrf.mxu0
        %v2125 = vadd.f32 0.0, %v2124
        %v2126 = vpop.f32.mrf.mxu0
        %2127 = vmatprep.mubr.bf16.mxu0 0
        %2128 = vmatmul.mubr.bf16.gmra.mxu0 %v1372
        %v2129 = vpop.f32.mrf.mxu0
        %v2130 = vadd.f32 0.0, %v2129
        %v2131 = vpop.f32.mrf.mxu0
        %v2132 = vpop.f32.mrf.mxu0
        %v2133 = vadd.f32 0.0, %v2132
        %v2134 = vpop.f32.mrf.mxu0
        %2135 = vmatprep.mubr.bf16.mxu0 0
        %2136 = vmatmul.mubr.bf16.gmra.mxu0 %v1375
        %v2137 = vpop.f32.mrf.mxu0
        %v2138 = vadd.f32 0.0, %v2137
        %v2139 = vpop.f32.mrf.mxu0
        %v2140 = vpop.f32.mrf.mxu0
        %v2141 = vadd.f32 0.0, %v2140
        %v2142 = vpop.f32.mrf.mxu0
        %2143 = vmatprep.mubr.bf16.mxu0 0
        %2144 = vmatmul.mubr.bf16.gmra.mxu0 %v1378
        %v2145 = vpop.f32.mrf.mxu0
        %v2146 = vadd.f32 0.0, %v2145
        %v2147 = vpop.f32.mrf.mxu0
        %v2148 = vpop.f32.mrf.mxu0
        %v2149 = vadd.f32 0.0, %v2148
        %v2150 = vpop.f32.mrf.mxu0
        %2151 = vmatprep.mubr.bf16.mxu0 0
        %2152 = vmatmul.mubr.bf16.gmra.mxu0 %v1381
        %v2153 = vpop.f32.mrf.mxu0
        %v2154 = vadd.f32 0.0, %v2153
        %v2155 = vpop.f32.mrf.mxu0
        %v2156 = vpop.f32.mrf.mxu0
        %v2157 = vadd.f32 0.0, %v2156
        %v2158 = vpop.f32.mrf.mxu0
        %2159 = vmatprep.mubr.bf16.mxu0 0
        %2160 = vmatmul.mubr.bf16.gmra.mxu0 %v1384
        %v2161 = vpop.f32.mrf.mxu0
        %v2162 = vadd.f32 0.0, %v2161
        %v2163 = vpop.f32.mrf.mxu0
        %v2164 = vpop.f32.mrf.mxu0
        %v2165 = vadd.f32 0.0, %v2164
        %v2166 = vpop.f32.mrf.mxu0
        %2167 = vmatprep.mubr.bf16.mxu0 0
        %2168 = vmatmul.mubr.bf16.gmra.mxu0 %v1387
        %v2169 = vpop.f32.mrf.mxu0
        %v2170 = vadd.f32 0.0, %v2169
        %v2171 = vpop.f32.mrf.mxu0
        %v2172 = vpop.f32.mrf.mxu0
        %v2173 = vadd.f32 0.0, %v2172
        %v2174 = vpop.f32.mrf.mxu0
        %2175 = vmatprep.mubr.bf16.mxu0 0
        %2176 = vmatmul.mubr.bf16.gmra.mxu0 %v1390
        %v2177 = vpop.f32.mrf.mxu0
        %v2178 = vadd.f32 0.0, %v2177
        %v2179 = vpop.f32.mrf.mxu0
        %v2180 = vpop.f32.mrf.mxu0
        %v2181 = vadd.f32 0.0, %v2180
        %v2182 = vpop.f32.mrf.mxu0
        %2183 = vmatprep.mubr.bf16.mxu0 0
        %2184 = vmatmul.mubr.bf16.gmra.mxu0 %v1393
        %v2185 = vpop.f32.mrf.mxu0
        %v2186 = vadd.f32 0.0, %v2185
        %v2187 = vpop.f32.mrf.mxu0
        %v2188 = vpop.f32.mrf.mxu0
        %v2189 = vadd.f32 0.0, %v2188
        %v2190 = vpop.f32.mrf.mxu0
        %2191 = vmatprep.mubr.bf16.mxu0 0
        %2192 = vmatmul.mubr.bf16.gmra.mxu0 %v1396
        %v2193 = vpop.f32.mrf.mxu0
        %v2194 = vadd.f32 0.0, %v2193
        %v2195 = vpop.f32.mrf.mxu0
        %v2196 = vpop.f32.mrf.mxu0
        %v2197 = vadd.f32 0.0, %v2196
        %v2198 = vpop.f32.mrf.mxu0
        %2199 = vmatprep.mubr.bf16.mxu0 0
        %2200 = vmatmul.mubr.bf16.gmra.mxu0 %v2042
        %v2201 = vpop.f32.mrf.mxu0
        %v2202 = vadd.f32 0.0, %v2201
        %v2203 = vpop.f32.mrf.mxu0
        %v2204 = vpop.f32.mrf.mxu0
        %v2205 = vadd.f32 0.0, %v2204
        %v2206 = vpop.f32.mrf.mxu0
        %2207 = vdwg.mxu0
        %v2208 = vadd.f32 %v1996, %v2082
        %v2209 = vadd.f32 %v1997, %v2085
        %v2210 = vadd.f32 %v1998, %v2090
        %v2211 = vadd.f32 %v1999, %v2093
        %v2212 = vadd.f32 %v2000, %v2098
        %v2213 = vadd.f32 %v2001, %v2101
        %v2214 = vadd.f32 %v2002, %v2106
        %v2215 = vadd.f32 %v2003, %v2109
        %v2216 = vadd.f32 %v2004, %v2114
        %v2217 = vadd.f32 %v2005, %v2117
        %v2218 = vadd.f32 %v2006, %v2122
        %v2219 = vadd.f32 %v2007, %v2125
        %v2220 = vadd.f32 %v2008, %v2130
        %v2221 = vadd.f32 %v2009, %v2133
        %v2222 = vadd.f32 %v2010, %v2138
        %v2223 = vadd.f32 %v2011, %v2141
        %v2224 = vadd.f32 %v2012, %v2146
        %v2225 = vadd.f32 %v2013, %v2149
        %v2226 = vadd.f32 %v2014, %v2154
        %v2227 = vadd.f32 %v2015, %v2157
        %v2228 = vadd.f32 %v2016, %v2162
        %v2229 = vadd.f32 %v2017, %v2165
        %v2230 = vadd.f32 %v2018, %v2170
        %v2231 = vadd.f32 %v2019, %v2173
        %v2232 = vadd.f32 %v2020, %v2178
        %v2233 = vadd.f32 %v2021, %v2181
        %v2234 = vadd.f32 %v2022, %v2186
        %v2235 = vadd.f32 %v2023, %v2189
        %v2236 = vadd.f32 %v2024, %v2194
        %v2237 = vadd.f32 %v2025, %v2197
        %v2238 = vadd.f32 %v2026, %v2202
        %v2239 = vadd.f32 %v2027, %v2205
        %s2240 = scalar_lea.vmem %s1, 12
        %v2241 = vld [vmem:[%s2240] sm:$0x3]
        %v2244 = vunpack.c.l.b16 %v222
        %v2245 = vunpack.c.l.b16 %v223
        %v2246 = vpack.c.b16 %v2245, %v2244
        %v2248 = vsel %vm663, %v2246, 0
        %v2251 = vsel %vm712, %v2241, 0
        %2253 = vmatprep.subr.bf16.mxu0 0
        %2254 = vmatpush1.bf16.msra.mxu0 0
        %2255 = vmatprep.subr.bf16.mxu0 0
        %2256 = vmatpush1.bf16.msra.mxu0 0
        %2257 = vmatprep.subr.bf16.mxu0 0
        %2258 = vmatpush1.bf16.msra.mxu0 0
        %2259 = vmatprep.subr.bf16.mxu0 0
        %2260 = vmatpush1.bf16.msra.mxu0 0
        %2261 = vmatprep.subr.bf16.mxu0 0
        %2262 = vmatpush1.bf16.msra.mxu0 0
        %2263 = vmatprep.subr.bf16.mxu0 0
        %2264 = vmatpush1.bf16.msra.mxu0 0
        %2265 = vmatprep.subr.bf16.mxu0 0
        %2266 = vmatpush1.bf16.msra.mxu0 0
        %2267 = vmatprep.subr.bf16.mxu0 0
        %2268 = vmatpush1.bf16.msra.mxu0 %v2251
        %2269 = vmatprep.subr.bf16.mxu0 0
        %2270 = vmatpush2.bf16.msra.mxu0 0
        %2271 = vmatprep.subr.bf16.mxu0 0
        %2272 = vmatpush2.bf16.msra.mxu0 0
        %2273 = vmatprep.subr.bf16.mxu0 0
        %2274 = vmatpush2.bf16.msra.mxu0 0
        %2275 = vmatprep.subr.bf16.mxu0 0
        %2276 = vmatpush2.bf16.msra.mxu0 0
        %2277 = vmatprep.subr.bf16.mxu0 0
        %2278 = vmatpush2.bf16.msra.mxu0 0
        %2279 = vmatprep.subr.bf16.mxu0 0
        %2280 = vmatpush2.bf16.msra.mxu0 0
        %2281 = vmatprep.subr.bf16.mxu0 0
        %2282 = vmatpush2.bf16.msra.mxu0 0
        %2283 = vmatprep.subr.bf16.mxu0 0
        %2284 = vmatpush2.bf16.msra.mxu0 0
        %2285 = vmatprep.mubr.bf16.mxu0 0
        %2286 = vmatmul.mubr.bf16.gmra.mxu0 %v964
        %v2287 = vpop.f32.mrf.mxu0
        %v2288 = vadd.f32 0.0, %v2287
        %v2289 = vpop.f32.mrf.mxu0
        %v2290 = vpop.f32.mrf.mxu0
        %v2291 = vadd.f32 0.0, %v2290
        %v2292 = vpop.f32.mrf.mxu0
        %2293 = vmatprep.mubr.bf16.mxu0 0
        %2294 = vmatmul.mubr.bf16.gmra.mxu0 %v967
        %v2295 = vpop.f32.mrf.mxu0
        %v2296 = vadd.f32 0.0, %v2295
        %v2297 = vpop.f32.mrf.mxu0
        %v2298 = vpop.f32.mrf.mxu0
        %v2299 = vadd.f32 0.0, %v2298
        %v2300 = vpop.f32.mrf.mxu0
        %2301 = vmatprep.mubr.bf16.mxu0 0
        %2302 = vmatmul.mubr.bf16.gmra.mxu0 %v970
        %v2303 = vpop.f32.mrf.mxu0
        %v2304 = vadd.f32 0.0, %v2303
        %v2305 = vpop.f32.mrf.mxu0
        %v2306 = vpop.f32.mrf.mxu0
        %v2307 = vadd.f32 0.0, %v2306
        %v2308 = vpop.f32.mrf.mxu0
        %2309 = vmatprep.mubr.bf16.mxu0 0
        %2310 = vmatmul.mubr.bf16.gmra.mxu0 %v973
        %v2311 = vpop.f32.mrf.mxu0
        %v2312 = vadd.f32 0.0, %v2311
        %v2313 = vpop.f32.mrf.mxu0
        %v2314 = vpop.f32.mrf.mxu0
        %v2315 = vadd.f32 0.0, %v2314
        %v2316 = vpop.f32.mrf.mxu0
        %2317 = vmatprep.mubr.bf16.mxu0 0
        %2318 = vmatmul.mubr.bf16.gmra.mxu0 %v976
        %v2319 = vpop.f32.mrf.mxu0
        %v2320 = vadd.f32 0.0, %v2319
        %v2321 = vpop.f32.mrf.mxu0
        %v2322 = vpop.f32.mrf.mxu0
        %v2323 = vadd.f32 0.0, %v2322
        %v2324 = vpop.f32.mrf.mxu0
        %2325 = vmatprep.mubr.bf16.mxu0 0
        %2326 = vmatmul.mubr.bf16.gmra.mxu0 %v979
        %v2327 = vpop.f32.mrf.mxu0
        %v2328 = vadd.f32 0.0, %v2327
        %v2329 = vpop.f32.mrf.mxu0
        %v2330 = vpop.f32.mrf.mxu0
        %v2331 = vadd.f32 0.0, %v2330
        %v2332 = vpop.f32.mrf.mxu0
        %2333 = vmatprep.mubr.bf16.mxu0 0
        %2334 = vmatmul.mubr.bf16.gmra.mxu0 %v982
        %v2335 = vpop.f32.mrf.mxu0
        %v2336 = vadd.f32 0.0, %v2335
        %v2337 = vpop.f32.mrf.mxu0
        %v2338 = vpop.f32.mrf.mxu0
        %v2339 = vadd.f32 0.0, %v2338
        %v2340 = vpop.f32.mrf.mxu0
        %2341 = vmatprep.mubr.bf16.mxu0 0
        %2342 = vmatmul.mubr.bf16.gmra.mxu0 %v985
        %v2343 = vpop.f32.mrf.mxu0
        %v2344 = vadd.f32 0.0, %v2343
        %v2345 = vpop.f32.mrf.mxu0
        %v2346 = vpop.f32.mrf.mxu0
        %v2347 = vadd.f32 0.0, %v2346
        %v2348 = vpop.f32.mrf.mxu0
        %2349 = vmatprep.mubr.bf16.mxu0 0
        %2350 = vmatmul.mubr.bf16.gmra.mxu0 %v988
        %v2351 = vpop.f32.mrf.mxu0
        %v2352 = vadd.f32 0.0, %v2351
        %v2353 = vpop.f32.mrf.mxu0
        %v2354 = vpop.f32.mrf.mxu0
        %v2355 = vadd.f32 0.0, %v2354
        %v2356 = vpop.f32.mrf.mxu0
        %2357 = vmatprep.mubr.bf16.mxu0 0
        %2358 = vmatmul.mubr.bf16.gmra.mxu0 %v991
        %v2359 = vpop.f32.mrf.mxu0
        %v2360 = vadd.f32 0.0, %v2359
        %v2361 = vpop.f32.mrf.mxu0
        %v2362 = vpop.f32.mrf.mxu0
        %v2363 = vadd.f32 0.0, %v2362
        %v2364 = vpop.f32.mrf.mxu0
        %2365 = vmatprep.mubr.bf16.mxu0 0
        %2366 = vmatmul.mubr.bf16.gmra.mxu0 %v994
        %v2367 = vpop.f32.mrf.mxu0
        %v2368 = vadd.f32 0.0, %v2367
        %v2369 = vpop.f32.mrf.mxu0
        %v2370 = vpop.f32.mrf.mxu0
        %v2371 = vadd.f32 0.0, %v2370
        %v2372 = vpop.f32.mrf.mxu0
        %2373 = vmatprep.mubr.bf16.mxu0 0
        %2374 = vmatmul.mubr.bf16.gmra.mxu0 %v997
        %v2375 = vpop.f32.mrf.mxu0
        %v2376 = vadd.f32 0.0, %v2375
        %v2377 = vpop.f32.mrf.mxu0
        %v2378 = vpop.f32.mrf.mxu0
        %v2379 = vadd.f32 0.0, %v2378
        %v2380 = vpop.f32.mrf.mxu0
        %2381 = vmatprep.mubr.bf16.mxu0 0
        %2382 = vmatmul.mubr.bf16.gmra.mxu0 %v1000
        %v2383 = vpop.f32.mrf.mxu0
        %v2384 = vadd.f32 0.0, %v2383
        %v2385 = vpop.f32.mrf.mxu0
        %v2386 = vpop.f32.mrf.mxu0
        %v2387 = vadd.f32 0.0, %v2386
        %v2388 = vpop.f32.mrf.mxu0
        %2389 = vmatprep.mubr.bf16.mxu0 0
        %2390 = vmatmul.mubr.bf16.gmra.mxu0 %v1003
        %v2391 = vpop.f32.mrf.mxu0
        %v2392 = vadd.f32 0.0, %v2391
        %v2393 = vpop.f32.mrf.mxu0
        %v2394 = vpop.f32.mrf.mxu0
        %v2395 = vadd.f32 0.0, %v2394
        %v2396 = vpop.f32.mrf.mxu0
        %2397 = vmatprep.mubr.bf16.mxu0 0
        %2398 = vmatmul.mubr.bf16.gmra.mxu0 %v1602
        %v2399 = vpop.f32.mrf.mxu0
        %v2400 = vadd.f32 0.0, %v2399
        %v2401 = vpop.f32.mrf.mxu0
        %v2402 = vpop.f32.mrf.mxu0
        %v2403 = vadd.f32 0.0, %v2402
        %v2404 = vpop.f32.mrf.mxu0
        %2405 = vmatprep.mubr.bf16.mxu0 0
        %2406 = vmatmul.mubr.bf16.gmra.mxu0 %v2248
        %v2407 = vpop.f32.mrf.mxu0
        %v2408 = vadd.f32 0.0, %v2407
        %v2409 = vpop.f32.mrf.mxu0
        %v2410 = vpop.f32.mrf.mxu0
        %v2411 = vadd.f32 0.0, %v2410
        %v2412 = vpop.f32.mrf.mxu0
        %2413 = vdwg.mxu0
        %v2414 = vadd.f32 %v2208, %v2288
        %v2415 = vadd.f32 %v2209, %v2291
        %v2416 = vadd.f32 %v2210, %v2296
        %v2417 = vadd.f32 %v2211, %v2299
        %v2418 = vadd.f32 %v2212, %v2304
        %v2419 = vadd.f32 %v2213, %v2307
        %v2420 = vadd.f32 %v2214, %v2312
        %v2421 = vadd.f32 %v2215, %v2315
        %v2422 = vadd.f32 %v2216, %v2320
        %v2423 = vadd.f32 %v2217, %v2323
        %v2424 = vadd.f32 %v2218, %v2328
        %v2425 = vadd.f32 %v2219, %v2331
        %v2426 = vadd.f32 %v2220, %v2336
        %v2427 = vadd.f32 %v2221, %v2339
        %v2428 = vadd.f32 %v2222, %v2344
        %v2429 = vadd.f32 %v2223, %v2347
        %v2430 = vadd.f32 %v2224, %v2352
        %v2431 = vadd.f32 %v2225, %v2355
        %v2432 = vadd.f32 %v2226, %v2360
        %v2433 = vadd.f32 %v2227, %v2363
        %v2434 = vadd.f32 %v2228, %v2368
        %v2435 = vadd.f32 %v2229, %v2371
        %v2436 = vadd.f32 %v2230, %v2376
        %v2437 = vadd.f32 %v2231, %v2379
        %v2438 = vadd.f32 %v2232, %v2384
        %v2439 = vadd.f32 %v2233, %v2387
        %v2440 = vadd.f32 %v2234, %v2392
        %v2441 = vadd.f32 %v2235, %v2395
        %v2442 = vadd.f32 %v2236, %v2400
        %v2443 = vadd.f32 %v2237, %v2403
        %v2444 = vadd.f32 %v2238, %v2408
        %v2445 = vadd.f32 %v2239, %v2411
        %v2447 = vshrl.u32 %v222, 16
        %v2449 = vrot.slane %v2447, 4
        %v2450 = vshll.u32 %v222, 16
        %v2452 = vrot.slane %v2450, 5
        %v2453 = vor.u32 %v2449, %v2452
        %v2454 = vrot.slane %v2453, 4
        %v2456 = vshll.u32 %v223, 16
        %v2458 = vrot.slane %v2456, 5
        %v2459 = vsel %vm228, %v2454, %v2458
        %v2460 = vshrl.u32 %v223, 16
        %v2462 = vrot.slane %v2460, 4
        %v2463 = vor.u32 %v2462, %v2458
        %v2464 = vrot.slane %v2463, 4
        %v2466 = vshll.u32 %v224, 16
        %v2468 = vrot.slane %v2466, 5
        %v2469 = vsel %vm228, %v2464, %v2468
        %s2470 = scalar_lea.vmem %s1, 14
        %v2471 = vld [vmem:[%s2470] sm:$0x3]
        %v2472 = vunpack.c.l.b16 %v2459
        %v2473 = vunpack.c.l.b16 %v2469
        %v2474 = vpack.c.b16 %v2473, %v2472
        %v2476 = vsel %vm663, %v2474, 0
        %v2479 = vsel %vm712, %v2471, 0
        %2481 = vmatprep.subr.bf16.mxu0 0
        %2482 = vmatpush1.bf16.msra.mxu0 0
        %2483 = vmatprep.subr.bf16.mxu0 0
        %2484 = vmatpush1.bf16.msra.mxu0 0
        %2485 = vmatprep.subr.bf16.mxu0 0
        %2486 = vmatpush1.bf16.msra.mxu0 0
        %2487 = vmatprep.subr.bf16.mxu0 0
        %2488 = vmatpush1.bf16.msra.mxu0 0
        %2489 = vmatprep.subr.bf16.mxu0 0
        %2490 = vmatpush1.bf16.msra.mxu0 0
        %2491 = vmatprep.subr.bf16.mxu0 0
        %2492 = vmatpush1.bf16.msra.mxu0 0
        %2493 = vmatprep.subr.bf16.mxu0 0
        %2494 = vmatpush1.bf16.msra.mxu0 0
        %2495 = vmatprep.subr.bf16.mxu0 0
        %2496 = vmatpush1.bf16.msra.mxu0 %v2479
        %2497 = vmatprep.subr.bf16.mxu0 0
        %2498 = vmatpush2.bf16.msra.mxu0 0
        %2499 = vmatprep.subr.bf16.mxu0 0
        %2500 = vmatpush2.bf16.msra.mxu0 0
        %2501 = vmatprep.subr.bf16.mxu0 0
        %2502 = vmatpush2.bf16.msra.mxu0 0
        %2503 = vmatprep.subr.bf16.mxu0 0
        %2504 = vmatpush2.bf16.msra.mxu0 0
        %2505 = vmatprep.subr.bf16.mxu0 0
        %2506 = vmatpush2.bf16.msra.mxu0 0
        %2507 = vmatprep.subr.bf16.mxu0 0
        %2508 = vmatpush2.bf16.msra.mxu0 0
        %2509 = vmatprep.subr.bf16.mxu0 0
        %2510 = vmatpush2.bf16.msra.mxu0 0
        %2511 = vmatprep.subr.bf16.mxu0 0
        %2512 = vmatpush2.bf16.msra.mxu0 0
        %2513 = vmatprep.mubr.bf16.mxu0 0
        %2514 = vmatmul.mubr.bf16.gmra.mxu0 %v671
        %v2515 = vpop.f32.mrf.mxu0
        %v2516 = vadd.f32 0.0, %v2515
        %v2517 = vpop.f32.mrf.mxu0
        %v2518 = vpop.f32.mrf.mxu0
        %v2519 = vadd.f32 0.0, %v2518
        %v2520 = vpop.f32.mrf.mxu0
        %2521 = vmatprep.mubr.bf16.mxu0 0
        %2522 = vmatmul.mubr.bf16.gmra.mxu0 %v674
        %v2523 = vpop.f32.mrf.mxu0
        %v2524 = vadd.f32 0.0, %v2523
        %v2525 = vpop.f32.mrf.mxu0
        %v2526 = vpop.f32.mrf.mxu0
        %v2527 = vadd.f32 0.0, %v2526
        %v2528 = vpop.f32.mrf.mxu0
        %2529 = vmatprep.mubr.bf16.mxu0 0
        %2530 = vmatmul.mubr.bf16.gmra.mxu0 %v677
        %v2531 = vpop.f32.mrf.mxu0
        %v2532 = vadd.f32 0.0, %v2531
        %v2533 = vpop.f32.mrf.mxu0
        %v2534 = vpop.f32.mrf.mxu0
        %v2535 = vadd.f32 0.0, %v2534
        %v2536 = vpop.f32.mrf.mxu0
        %2537 = vmatprep.mubr.bf16.mxu0 0
        %2538 = vmatmul.mubr.bf16.gmra.mxu0 %v680
        %v2539 = vpop.f32.mrf.mxu0
        %v2540 = vadd.f32 0.0, %v2539
        %v2541 = vpop.f32.mrf.mxu0
        %v2542 = vpop.f32.mrf.mxu0
        %v2543 = vadd.f32 0.0, %v2542
        %v2544 = vpop.f32.mrf.mxu0
        %2545 = vmatprep.mubr.bf16.mxu0 0
        %2546 = vmatmul.mubr.bf16.gmra.mxu0 %v683
        %v2547 = vpop.f32.mrf.mxu0
        %v2548 = vadd.f32 0.0, %v2547
        %v2549 = vpop.f32.mrf.mxu0
        %v2550 = vpop.f32.mrf.mxu0
        %v2551 = vadd.f32 0.0, %v2550
        %v2552 = vpop.f32.mrf.mxu0
        %2553 = vmatprep.mubr.bf16.mxu0 0
        %2554 = vmatmul.mubr.bf16.gmra.mxu0 %v686
        %v2555 = vpop.f32.mrf.mxu0
        %v2556 = vadd.f32 0.0, %v2555
        %v2557 = vpop.f32.mrf.mxu0
        %v2558 = vpop.f32.mrf.mxu0
        %v2559 = vadd.f32 0.0, %v2558
        %v2560 = vpop.f32.mrf.mxu0
        %2561 = vmatprep.mubr.bf16.mxu0 0
        %2562 = vmatmul.mubr.bf16.gmra.mxu0 %v689
        %v2563 = vpop.f32.mrf.mxu0
        %v2564 = vadd.f32 0.0, %v2563
        %v2565 = vpop.f32.mrf.mxu0
        %v2566 = vpop.f32.mrf.mxu0
        %v2567 = vadd.f32 0.0, %v2566
        %v2568 = vpop.f32.mrf.mxu0
        %2569 = vmatprep.mubr.bf16.mxu0 0
        %2570 = vmatmul.mubr.bf16.gmra.mxu0 %v692
        %v2571 = vpop.f32.mrf.mxu0
        %v2572 = vadd.f32 0.0, %v2571
        %v2573 = vpop.f32.mrf.mxu0
        %v2574 = vpop.f32.mrf.mxu0
        %v2575 = vadd.f32 0.0, %v2574
        %v2576 = vpop.f32.mrf.mxu0
        %2577 = vmatprep.mubr.bf16.mxu0 0
        %2578 = vmatmul.mubr.bf16.gmra.mxu0 %v695
        %v2579 = vpop.f32.mrf.mxu0
        %v2580 = vadd.f32 0.0, %v2579
        %v2581 = vpop.f32.mrf.mxu0
        %v2582 = vpop.f32.mrf.mxu0
        %v2583 = vadd.f32 0.0, %v2582
        %v2584 = vpop.f32.mrf.mxu0
        %2585 = vmatprep.mubr.bf16.mxu0 0
        %2586 = vmatmul.mubr.bf16.gmra.mxu0 %v698
        %v2587 = vpop.f32.mrf.mxu0
        %v2588 = vadd.f32 0.0, %v2587
        %v2589 = vpop.f32.mrf.mxu0
        %v2590 = vpop.f32.mrf.mxu0
        %v2591 = vadd.f32 0.0, %v2590
        %v2592 = vpop.f32.mrf.mxu0
        %2593 = vmatprep.mubr.bf16.mxu0 0
        %2594 = vmatmul.mubr.bf16.gmra.mxu0 %v701
        %v2595 = vpop.f32.mrf.mxu0
        %v2596 = vadd.f32 0.0, %v2595
        %v2597 = vpop.f32.mrf.mxu0
        %v2598 = vpop.f32.mrf.mxu0
        %v2599 = vadd.f32 0.0, %v2598
        %v2600 = vpop.f32.mrf.mxu0
        %2601 = vmatprep.mubr.bf16.mxu0 0
        %2602 = vmatmul.mubr.bf16.gmra.mxu0 %v704
        %v2603 = vpop.f32.mrf.mxu0
        %v2604 = vadd.f32 0.0, %v2603
        %v2605 = vpop.f32.mrf.mxu0
        %v2606 = vpop.f32.mrf.mxu0
        %v2607 = vadd.f32 0.0, %v2606
        %v2608 = vpop.f32.mrf.mxu0
        %2609 = vmatprep.mubr.bf16.mxu0 0
        %2610 = vmatmul.mubr.bf16.gmra.mxu0 %v707
        %v2611 = vpop.f32.mrf.mxu0
        %v2612 = vadd.f32 0.0, %v2611
        %v2613 = vpop.f32.mrf.mxu0
        %v2614 = vpop.f32.mrf.mxu0
        %v2615 = vadd.f32 0.0, %v2614
        %v2616 = vpop.f32.mrf.mxu0
        %2617 = vmatprep.mubr.bf16.mxu0 0
        %2618 = vmatmul.mubr.bf16.gmra.mxu0 %v710
        %v2619 = vpop.f32.mrf.mxu0
        %v2620 = vadd.f32 0.0, %v2619
        %v2621 = vpop.f32.mrf.mxu0
        %v2622 = vpop.f32.mrf.mxu0
        %v2623 = vadd.f32 0.0, %v2622
        %v2624 = vpop.f32.mrf.mxu0
        %2625 = vmatprep.mubr.bf16.mxu0 0
        %2626 = vmatmul.mubr.bf16.gmra.mxu0 %v1830
        %v2627 = vpop.f32.mrf.mxu0
        %v2628 = vadd.f32 0.0, %v2627
        %v2629 = vpop.f32.mrf.mxu0
        %v2630 = vpop.f32.mrf.mxu0
        %v2631 = vadd.f32 0.0, %v2630
        %v2632 = vpop.f32.mrf.mxu0
        %2633 = vmatprep.mubr.bf16.mxu0 0
        %2634 = vmatmul.mubr.bf16.gmra.mxu0 %v2476
        %v2635 = vpop.f32.mrf.mxu0
        %v2636 = vadd.f32 0.0, %v2635
        %v2637 = vpop.f32.mrf.mxu0
        %v2638 = vpop.f32.mrf.mxu0
        %v2639 = vadd.f32 0.0, %v2638
        %v2640 = vpop.f32.mrf.mxu0
        %2641 = vdwg.mxu0
        %v2642 = vadd.f32 %v2414, %v2516
        %v2643 = vadd.f32 %v2415, %v2519
        %v2644 = vadd.f32 %v2416, %v2524
        %v2645 = vadd.f32 %v2417, %v2527
        %v2646 = vadd.f32 %v2418, %v2532
        %v2647 = vadd.f32 %v2419, %v2535
        %v2648 = vadd.f32 %v2420, %v2540
        %v2649 = vadd.f32 %v2421, %v2543
        %v2650 = vadd.f32 %v2422, %v2548
        %v2651 = vadd.f32 %v2423, %v2551
        %v2652 = vadd.f32 %v2424, %v2556
        %v2653 = vadd.f32 %v2425, %v2559
        %v2654 = vadd.f32 %v2426, %v2564
        %v2655 = vadd.f32 %v2427, %v2567
        %v2656 = vadd.f32 %v2428, %v2572
        %v2657 = vadd.f32 %v2429, %v2575
        %v2658 = vadd.f32 %v2430, %v2580
        %v2659 = vadd.f32 %v2431, %v2583
        %v2660 = vadd.f32 %v2432, %v2588
        %v2661 = vadd.f32 %v2433, %v2591
        %v2662 = vadd.f32 %v2434, %v2596
        %v2663 = vadd.f32 %v2435, %v2599
        %v2664 = vadd.f32 %v2436, %v2604
        %v2665 = vadd.f32 %v2437, %v2607
        %v2666 = vadd.f32 %v2438, %v2612
        %v2667 = vadd.f32 %v2439, %v2615
        %v2668 = vadd.f32 %v2440, %v2620
        %v2669 = vadd.f32 %v2441, %v2623
        %v2670 = vadd.f32 %v2442, %v2628
        %v2671 = vadd.f32 %v2443, %v2631
        %v2672 = vadd.f32 %v2444, %v2636
        %v2673 = vadd.f32 %v2445, %v2639
        %v2675 = vrot.slane %v222, 5
        %v2676 = vrot.slane %v2675, 4
        %v2677 = vrot.slane %v223, 5
        %v2678 = vsel %vm1187, %v2676, %v2677
        %v2679 = vrot.slane %v2677, 4
        %v2680 = vrot.slane %v224, 5
        %v2681 = vsel %vm1187, %v2679, %v2680
        %s2682 = scalar_lea.vmem %s1, 16
        %v2683 = vld [vmem:[%s2682] sm:$0x3]
        %v2684 = vunpack.c.l.b16 %v2678
        %v2685 = vunpack.c.l.b16 %v2681
        %v2686 = vpack.c.b16 %v2685, %v2684
        %v2688 = vsel %vm663, %v2686, 0
        %v2691 = vsel %vm712, %v2683, 0
        %2693 = vmatprep.subr.bf16.mxu0 0
        %2694 = vmatpush1.bf16.msra.mxu0 0
        %2695 = vmatprep.subr.bf16.mxu0 0
        %2696 = vmatpush1.bf16.msra.mxu0 0
        %2697 = vmatprep.subr.bf16.mxu0 0
        %2698 = vmatpush1.bf16.msra.mxu0 0
        %2699 = vmatprep.subr.bf16.mxu0 0
        %2700 = vmatpush1.bf16.msra.mxu0 0
        %2701 = vmatprep.subr.bf16.mxu0 0
        %2702 = vmatpush1.bf16.msra.mxu0 0
        %2703 = vmatprep.subr.bf16.mxu0 0
        %2704 = vmatpush1.bf16.msra.mxu0 0
        %2705 = vmatprep.subr.bf16.mxu0 0
        %2706 = vmatpush1.bf16.msra.mxu0 0
        %2707 = vmatprep.subr.bf16.mxu0 0
        %2708 = vmatpush1.bf16.msra.mxu0 %v2691
        %2709 = vmatprep.subr.bf16.mxu0 0
        %2710 = vmatpush2.bf16.msra.mxu0 0
        %2711 = vmatprep.subr.bf16.mxu0 0
        %2712 = vmatpush2.bf16.msra.mxu0 0
        %2713 = vmatprep.subr.bf16.mxu0 0
        %2714 = vmatpush2.bf16.msra.mxu0 0
        %2715 = vmatprep.subr.bf16.mxu0 0
        %2716 = vmatpush2.bf16.msra.mxu0 0
        %2717 = vmatprep.subr.bf16.mxu0 0
        %2718 = vmatpush2.bf16.msra.mxu0 0
        %2719 = vmatprep.subr.bf16.mxu0 0
        %2720 = vmatpush2.bf16.msra.mxu0 0
        %2721 = vmatprep.subr.bf16.mxu0 0
        %2722 = vmatpush2.bf16.msra.mxu0 0
        %2723 = vmatprep.subr.bf16.mxu0 0
        %2724 = vmatpush2.bf16.msra.mxu0 0
        %2725 = vmatprep.mubr.bf16.mxu0 0
        %2726 = vmatmul.mubr.bf16.gmra.mxu0 %v1357
        %v2727 = vpop.f32.mrf.mxu0
        %v2728 = vadd.f32 0.0, %v2727
        %v2729 = vpop.f32.mrf.mxu0
        %v2730 = vpop.f32.mrf.mxu0
        %v2731 = vadd.f32 0.0, %v2730
        %v2732 = vpop.f32.mrf.mxu0
        %2733 = vmatprep.mubr.bf16.mxu0 0
        %2734 = vmatmul.mubr.bf16.gmra.mxu0 %v1360
        %v2735 = vpop.f32.mrf.mxu0
        %v2736 = vadd.f32 0.0, %v2735
        %v2737 = vpop.f32.mrf.mxu0
        %v2738 = vpop.f32.mrf.mxu0
        %v2739 = vadd.f32 0.0, %v2738
        %v2740 = vpop.f32.mrf.mxu0
        %2741 = vmatprep.mubr.bf16.mxu0 0
        %2742 = vmatmul.mubr.bf16.gmra.mxu0 %v1363
        %v2743 = vpop.f32.mrf.mxu0
        %v2744 = vadd.f32 0.0, %v2743
        %v2745 = vpop.f32.mrf.mxu0
        %v2746 = vpop.f32.mrf.mxu0
        %v2747 = vadd.f32 0.0, %v2746
        %v2748 = vpop.f32.mrf.mxu0
        %2749 = vmatprep.mubr.bf16.mxu0 0
        %2750 = vmatmul.mubr.bf16.gmra.mxu0 %v1366
        %v2751 = vpop.f32.mrf.mxu0
        %v2752 = vadd.f32 0.0, %v2751
        %v2753 = vpop.f32.mrf.mxu0
        %v2754 = vpop.f32.mrf.mxu0
        %v2755 = vadd.f32 0.0, %v2754
        %v2756 = vpop.f32.mrf.mxu0
        %2757 = vmatprep.mubr.bf16.mxu0 0
        %2758 = vmatmul.mubr.bf16.gmra.mxu0 %v1369
        %v2759 = vpop.f32.mrf.mxu0
        %v2760 = vadd.f32 0.0, %v2759
        %v2761 = vpop.f32.mrf.mxu0
        %v2762 = vpop.f32.mrf.mxu0
        %v2763 = vadd.f32 0.0, %v2762
        %v2764 = vpop.f32.mrf.mxu0
        %2765 = vmatprep.mubr.bf16.mxu0 0
        %2766 = vmatmul.mubr.bf16.gmra.mxu0 %v1372
        %v2767 = vpop.f32.mrf.mxu0
        %v2768 = vadd.f32 0.0, %v2767
        %v2769 = vpop.f32.mrf.mxu0
        %v2770 = vpop.f32.mrf.mxu0
        %v2771 = vadd.f32 0.0, %v2770
        %v2772 = vpop.f32.mrf.mxu0
        %2773 = vmatprep.mubr.bf16.mxu0 0
        %2774 = vmatmul.mubr.bf16.gmra.mxu0 %v1375
        %v2775 = vpop.f32.mrf.mxu0
        %v2776 = vadd.f32 0.0, %v2775
        %v2777 = vpop.f32.mrf.mxu0
        %v2778 = vpop.f32.mrf.mxu0
        %v2779 = vadd.f32 0.0, %v2778
        %v2780 = vpop.f32.mrf.mxu0
        %2781 = vmatprep.mubr.bf16.mxu0 0
        %2782 = vmatmul.mubr.bf16.gmra.mxu0 %v1378
        %v2783 = vpop.f32.mrf.mxu0
        %v2784 = vadd.f32 0.0, %v2783
        %v2785 = vpop.f32.mrf.mxu0
        %v2786 = vpop.f32.mrf.mxu0
        %v2787 = vadd.f32 0.0, %v2786
        %v2788 = vpop.f32.mrf.mxu0
        %2789 = vmatprep.mubr.bf16.mxu0 0
        %2790 = vmatmul.mubr.bf16.gmra.mxu0 %v1381
        %v2791 = vpop.f32.mrf.mxu0
        %v2792 = vadd.f32 0.0, %v2791
        %v2793 = vpop.f32.mrf.mxu0
        %v2794 = vpop.f32.mrf.mxu0
        %v2795 = vadd.f32 0.0, %v2794
        %v2796 = vpop.f32.mrf.mxu0
        %2797 = vmatprep.mubr.bf16.mxu0 0
        %2798 = vmatmul.mubr.bf16.gmra.mxu0 %v1384
        %v2799 = vpop.f32.mrf.mxu0
        %v2800 = vadd.f32 0.0, %v2799
        %v2801 = vpop.f32.mrf.mxu0
        %v2802 = vpop.f32.mrf.mxu0
        %v2803 = vadd.f32 0.0, %v2802
        %v2804 = vpop.f32.mrf.mxu0
        %2805 = vmatprep.mubr.bf16.mxu0 0
        %2806 = vmatmul.mubr.bf16.gmra.mxu0 %v1387
        %v2807 = vpop.f32.mrf.mxu0
        %v2808 = vadd.f32 0.0, %v2807
        %v2809 = vpop.f32.mrf.mxu0
        %v2810 = vpop.f32.mrf.mxu0
        %v2811 = vadd.f32 0.0, %v2810
        %v2812 = vpop.f32.mrf.mxu0
        %2813 = vmatprep.mubr.bf16.mxu0 0
        %2814 = vmatmul.mubr.bf16.gmra.mxu0 %v1390
        %v2815 = vpop.f32.mrf.mxu0
        %v2816 = vadd.f32 0.0, %v2815
        %v2817 = vpop.f32.mrf.mxu0
        %v2818 = vpop.f32.mrf.mxu0
        %v2819 = vadd.f32 0.0, %v2818
        %v2820 = vpop.f32.mrf.mxu0
        %2821 = vmatprep.mubr.bf16.mxu0 0
        %2822 = vmatmul.mubr.bf16.gmra.mxu0 %v1393
        %v2823 = vpop.f32.mrf.mxu0
        %v2824 = vadd.f32 0.0, %v2823
        %v2825 = vpop.f32.mrf.mxu0
        %v2826 = vpop.f32.mrf.mxu0
        %v2827 = vadd.f32 0.0, %v2826
        %v2828 = vpop.f32.mrf.mxu0
        %2829 = vmatprep.mubr.bf16.mxu0 0
        %2830 = vmatmul.mubr.bf16.gmra.mxu0 %v1396
        %v2831 = vpop.f32.mrf.mxu0
        %v2832 = vadd.f32 0.0, %v2831
        %v2833 = vpop.f32.mrf.mxu0
        %v2834 = vpop.f32.mrf.mxu0
        %v2835 = vadd.f32 0.0, %v2834
        %v2836 = vpop.f32.mrf.mxu0
        %2837 = vmatprep.mubr.bf16.mxu0 0
        %2838 = vmatmul.mubr.bf16.gmra.mxu0 %v2042
        %v2839 = vpop.f32.mrf.mxu0
        %v2840 = vadd.f32 0.0, %v2839
        %v2841 = vpop.f32.mrf.mxu0
        %v2842 = vpop.f32.mrf.mxu0
        %v2843 = vadd.f32 0.0, %v2842
        %v2844 = vpop.f32.mrf.mxu0
        %2845 = vmatprep.mubr.bf16.mxu0 0
        %2846 = vmatmul.mubr.bf16.gmra.mxu0 %v2688
        %v2847 = vpop.f32.mrf.mxu0
        %v2848 = vadd.f32 0.0, %v2847
        %v2849 = vpop.f32.mrf.mxu0
        %v2850 = vpop.f32.mrf.mxu0
        %v2851 = vadd.f32 0.0, %v2850
        %v2852 = vpop.f32.mrf.mxu0
        %2853 = vdwg.mxu0
        %v2854 = vadd.f32 %v2642, %v2728
        %v2855 = vadd.f32 %v2643, %v2731
        %v2856 = vadd.f32 %v2644, %v2736
        %v2857 = vadd.f32 %v2645, %v2739
        %v2858 = vadd.f32 %v2646, %v2744
        %v2859 = vadd.f32 %v2647, %v2747
        %v2860 = vadd.f32 %v2648, %v2752
        %v2861 = vadd.f32 %v2649, %v2755
        %v2862 = vadd.f32 %v2650, %v2760
        %v2863 = vadd.f32 %v2651, %v2763
        %v2864 = vadd.f32 %v2652, %v2768
        %v2865 = vadd.f32 %v2653, %v2771
        %v2866 = vadd.f32 %v2654, %v2776
        %v2867 = vadd.f32 %v2655, %v2779
        %v2868 = vadd.f32 %v2656, %v2784
        %v2869 = vadd.f32 %v2657, %v2787
        %v2870 = vadd.f32 %v2658, %v2792
        %v2871 = vadd.f32 %v2659, %v2795
        %v2872 = vadd.f32 %v2660, %v2800
        %v2873 = vadd.f32 %v2661, %v2803
        %v2874 = vadd.f32 %v2662, %v2808
        %v2875 = vadd.f32 %v2663, %v2811
        %v2876 = vadd.f32 %v2664, %v2816
        %v2877 = vadd.f32 %v2665, %v2819
        %v2878 = vadd.f32 %v2666, %v2824
        %v2879 = vadd.f32 %v2667, %v2827
        %v2880 = vadd.f32 %v2668, %v2832
        %v2881 = vadd.f32 %v2669, %v2835
        %v2882 = vadd.f32 %v2670, %v2840
        %v2883 = vadd.f32 %v2671, %v2843
        %v2884 = vadd.f32 %v2672, %v2848
        %v2885 = vadd.f32 %v2673, %v2851
        %v2886 = vld [vmem:[%s2] sm:$0x1]
        %v2887 = vlaneseq
        %v2888 = vshrl.u32 %v2887, 7
        %v2889 = vsub.s32 0, %v2888
        %v2890 = vrot.slane %v2886, %v2889
        %v2891 = vmul.f32 %v2854, %v2890
        %v2892 = vmul.f32 %v2855, %v2890
        %v2893 = vmul.f32 %v2856, %v2890
        %v2894 = vmul.f32 %v2857, %v2890
        %v2895 = vmul.f32 %v2858, %v2890
        %v2896 = vmul.f32 %v2859, %v2890
        %v2897 = vmul.f32 %v2860, %v2890
        %v2898 = vmul.f32 %v2861, %v2890
        %v2899 = vmul.f32 %v2862, %v2890
        %v2900 = vmul.f32 %v2863, %v2890
        %v2901 = vmul.f32 %v2864, %v2890
        %v2902 = vmul.f32 %v2865, %v2890
        %v2903 = vmul.f32 %v2866, %v2890
        %v2904 = vmul.f32 %v2867, %v2890
        %v2905 = vmul.f32 %v2868, %v2890
        %v2906 = vmul.f32 %v2869, %v2890
        %v2907 = vmul.f32 %v2870, %v2890
        %v2908 = vmul.f32 %v2871, %v2890
        %v2909 = vmul.f32 %v2872, %v2890
        %v2910 = vmul.f32 %v2873, %v2890
        %v2911 = vmul.f32 %v2874, %v2890
        %v2912 = vmul.f32 %v2875, %v2890
        %v2913 = vmul.f32 %v2876, %v2890
        %v2914 = vmul.f32 %v2877, %v2890
        %v2915 = vmul.f32 %v2878, %v2890
        %v2916 = vmul.f32 %v2879, %v2890
        %v2917 = vmul.f32 %v2880, %v2890
        %v2918 = vmul.f32 %v2881, %v2890
        %v2919 = vmul.f32 %v2882, %v2890
        %v2920 = vmul.f32 %v2883, %v2890
        %v2921 = vmul.f32 %v2884, %v2890
        %v2922 = vmul.f32 %v2885, %v2890
        %v2923 = vld [vmem:[%s2 + $0x1] sm:$0x1]
        %v2924 = vlaneseq
        %v2925 = vshrl.u32 %v2924, 7
        %v2926 = vsub.s32 0, %v2925
        %v2927 = vrot.slane %v2923, %v2926
        %v2928 = vadd.f32 %v2891, %v2927
        %v2929 = vadd.f32 %v2892, %v2927
        %v2930 = vadd.f32 %v2893, %v2927
        %v2931 = vadd.f32 %v2894, %v2927
        %v2932 = vadd.f32 %v2895, %v2927
        %v2933 = vadd.f32 %v2896, %v2927
        %v2934 = vadd.f32 %v2897, %v2927
        %v2935 = vadd.f32 %v2898, %v2927
        %v2936 = vadd.f32 %v2899, %v2927
        %v2937 = vadd.f32 %v2900, %v2927
        %v2938 = vadd.f32 %v2901, %v2927
        %v2939 = vadd.f32 %v2902, %v2927
        %v2940 = vadd.f32 %v2903, %v2927
        %v2941 = vadd.f32 %v2904, %v2927
        %v2942 = vadd.f32 %v2905, %v2927
        %v2943 = vadd.f32 %v2906, %v2927
        %v2944 = vadd.f32 %v2907, %v2927
        %v2945 = vadd.f32 %v2908, %v2927
        %v2946 = vadd.f32 %v2909, %v2927
        %v2947 = vadd.f32 %v2910, %v2927
        %v2948 = vadd.f32 %v2911, %v2927
        %v2949 = vadd.f32 %v2912, %v2927
        %v2950 = vadd.f32 %v2913, %v2927
        %v2951 = vadd.f32 %v2914, %v2927
        %v2952 = vadd.f32 %v2915, %v2927
        %v2953 = vadd.f32 %v2916, %v2927
        %v2954 = vadd.f32 %v2917, %v2927
        %v2955 = vadd.f32 %v2918, %v2927
        %v2956 = vadd.f32 %v2919, %v2927
        %v2957 = vadd.f32 %v2920, %v2927
        %v2958 = vadd.f32 %v2921, %v2927
        %v2959 = vadd.f32 %v2922, %v2927
        %v2960 = vxor.u32 %v2928, 2147483648
        %v2961 = vxor.u32 %v2929, 2147483648
        %v2962 = vxor.u32 %v2930, 2147483648
        %v2963 = vxor.u32 %v2931, 2147483648
        %v2964 = vxor.u32 %v2932, 2147483648
        %v2965 = vxor.u32 %v2933, 2147483648
        %v2966 = vxor.u32 %v2934, 2147483648
        %v2967 = vxor.u32 %v2935, 2147483648
        %v2968 = vxor.u32 %v2936, 2147483648
        %v2969 = vxor.u32 %v2937, 2147483648
        %v2970 = vxor.u32 %v2938, 2147483648
        %v2971 = vxor.u32 %v2939, 2147483648
        %v2972 = vxor.u32 %v2940, 2147483648
        %v2973 = vxor.u32 %v2941, 2147483648
        %v2974 = vxor.u32 %v2942, 2147483648
        %v2975 = vxor.u32 %v2943, 2147483648
        %v2976 = vxor.u32 %v2944, 2147483648
        %v2977 = vxor.u32 %v2945, 2147483648
        %v2978 = vxor.u32 %v2946, 2147483648
        %v2979 = vxor.u32 %v2947, 2147483648
        %v2980 = vxor.u32 %v2948, 2147483648
        %v2981 = vxor.u32 %v2949, 2147483648
        %v2982 = vxor.u32 %v2950, 2147483648
        %v2983 = vxor.u32 %v2951, 2147483648
        %v2984 = vxor.u32 %v2952, 2147483648
        %v2985 = vxor.u32 %v2953, 2147483648
        %v2986 = vxor.u32 %v2954, 2147483648
        %v2987 = vxor.u32 %v2955, 2147483648
        %v2988 = vxor.u32 %v2956, 2147483648
        %v2989 = vxor.u32 %v2957, 2147483648
        %v2990 = vxor.u32 %v2958, 2147483648
        %v2991 = vxor.u32 %v2959, 2147483648
        %v2992 = vmul.f32 %v2960, 1.442695
        %v2993 = vpow.pop %v2992
        %v2994 = vmul.f32 %v2961, 1.442695
        %v2995 = vpow.pop %v2994
        %v2996 = vmul.f32 %v2962, 1.442695
        %v2997 = vpow.pop %v2996
        %v2998 = vmul.f32 %v2963, 1.442695
        %v2999 = vpow.pop %v2998
        %v3000 = vmul.f32 %v2964, 1.442695
        %v3001 = vpow.pop %v3000
        %v3002 = vmul.f32 %v2965, 1.442695
        %v3003 = vpow.pop %v3002
        %v3004 = vmul.f32 %v2966, 1.442695
        %v3005 = vpow.pop %v3004
        %v3006 = vmul.f32 %v2967, 1.442695
        %v3007 = vpow.pop %v3006
        %v3008 = vmul.f32 %v2968, 1.442695
        %v3009 = vpow.pop %v3008
        %v3010 = vmul.f32 %v2969, 1.442695
        %v3011 = vpow.pop %v3010
        %v3012 = vmul.f32 %v2970, 1.442695
        %v3013 = vpow.pop %v3012
        %v3014 = vmul.f32 %v2971, 1.442695
        %v3015 = vpow.pop %v3014
        %v3016 = vmul.f32 %v2972, 1.442695
        %v3017 = vpow.pop %v3016
        %v3018 = vmul.f32 %v2973, 1.442695
        %v3019 = vpow.pop %v3018
        %v3020 = vmul.f32 %v2974, 1.442695
        %v3021 = vpow.pop %v3020
        %v3022 = vmul.f32 %v2975, 1.442695
        %v3023 = vpow.pop %v3022
        %v3024 = vmul.f32 %v2976, 1.442695
        %v3025 = vpow.pop %v3024
        %v3026 = vmul.f32 %v2977, 1.442695
        %v3027 = vpow.pop %v3026
        %v3028 = vmul.f32 %v2978, 1.442695
        %v3029 = vpow.pop %v3028
        %v3030 = vmul.f32 %v2979, 1.442695
        %v3031 = vpow.pop %v3030
        %v3032 = vmul.f32 %v2980, 1.442695
        %v3033 = vpow.pop %v3032
        %v3034 = vmul.f32 %v2981, 1.442695
        %v3035 = vpow.pop %v3034
        %v3036 = vmul.f32 %v2982, 1.442695
        %v3037 = vpow.pop %v3036
        %v3038 = vmul.f32 %v2983, 1.442695
        %v3039 = vpow.pop %v3038
        %v3040 = vmul.f32 %v2984, 1.442695
        %v3041 = vpow.pop %v3040
        %v3042 = vmul.f32 %v2985, 1.442695
        %v3043 = vpow.pop %v3042
        %v3044 = vmul.f32 %v2986, 1.442695
        %v3045 = vpow.pop %v3044
        %v3046 = vmul.f32 %v2987, 1.442695
        %v3047 = vpow.pop %v3046
        %v3048 = vmul.f32 %v2988, 1.442695
        %v3049 = vpow.pop %v3048
        %v3050 = vmul.f32 %v2989, 1.442695
        %v3051 = vpow.pop %v3050
        %v3052 = vmul.f32 %v2990, 1.442695
        %v3053 = vpow.pop %v3052
        %v3054 = vmul.f32 %v2991, 1.442695
        %v3055 = vpow.pop %v3054
        %v3056 = vadd.f32 %v2993, 1.0
        %v3057 = vadd.f32 %v2995, 1.0
        %v3058 = vadd.f32 %v2997, 1.0
        %v3059 = vadd.f32 %v2999, 1.0
        %v3060 = vadd.f32 %v3001, 1.0
        %v3061 = vadd.f32 %v3003, 1.0
        %v3062 = vadd.f32 %v3005, 1.0
        %v3063 = vadd.f32 %v3007, 1.0
        %v3064 = vadd.f32 %v3009, 1.0
        %v3065 = vadd.f32 %v3011, 1.0
        %v3066 = vadd.f32 %v3013, 1.0
        %v3067 = vadd.f32 %v3015, 1.0
        %v3068 = vadd.f32 %v3017, 1.0
        %v3069 = vadd.f32 %v3019, 1.0
        %v3070 = vadd.f32 %v3021, 1.0
        %v3071 = vadd.f32 %v3023, 1.0
        %v3072 = vadd.f32 %v3025, 1.0
        %v3073 = vadd.f32 %v3027, 1.0
        %v3074 = vadd.f32 %v3029, 1.0
        %v3075 = vadd.f32 %v3031, 1.0
        %v3076 = vadd.f32 %v3033, 1.0
        %v3077 = vadd.f32 %v3035, 1.0
        %v3078 = vadd.f32 %v3037, 1.0
        %v3079 = vadd.f32 %v3039, 1.0
        %v3080 = vadd.f32 %v3041, 1.0
        %v3081 = vadd.f32 %v3043, 1.0
        %v3082 = vadd.f32 %v3045, 1.0
        %v3083 = vadd.f32 %v3047, 1.0
        %v3084 = vadd.f32 %v3049, 1.0
        %v3085 = vadd.f32 %v3051, 1.0
        %v3086 = vadd.f32 %v3053, 1.0
        %v3087 = vadd.f32 %v3055, 1.0
        %v3088 = vrcp.pop %v3056
        %v3089 = vmul.f32 1.0, %v3088
        %v3090 = vrcp.pop %v3057
        %v3091 = vmul.f32 1.0, %v3090
        %v3092 = vrcp.pop %v3058
        %v3093 = vmul.f32 1.0, %v3092
        %v3094 = vrcp.pop %v3059
        %v3095 = vmul.f32 1.0, %v3094
        %v3096 = vrcp.pop %v3060
        %v3097 = vmul.f32 1.0, %v3096
        %v3098 = vrcp.pop %v3061
        %v3099 = vmul.f32 1.0, %v3098
        %v3100 = vrcp.pop %v3062
        %v3101 = vmul.f32 1.0, %v3100
        %v3102 = vrcp.pop %v3063
        %v3103 = vmul.f32 1.0, %v3102
        %v3104 = vrcp.pop %v3064
        %v3105 = vmul.f32 1.0, %v3104
        %v3106 = vrcp.pop %v3065
        %v3107 = vmul.f32 1.0, %v3106
        %v3108 = vrcp.pop %v3066
        %v3109 = vmul.f32 1.0, %v3108
        %v3110 = vrcp.pop %v3067
        %v3111 = vmul.f32 1.0, %v3110
        %v3112 = vrcp.pop %v3068
        %v3113 = vmul.f32 1.0, %v3112
        %v3114 = vrcp.pop %v3069
        %v3115 = vmul.f32 1.0, %v3114
        %v3116 = vrcp.pop %v3070
        %v3117 = vmul.f32 1.0, %v3116
        %v3118 = vrcp.pop %v3071
        %v3119 = vmul.f32 1.0, %v3118
        %v3120 = vrcp.pop %v3072
        %v3121 = vmul.f32 1.0, %v3120
        %v3122 = vrcp.pop %v3073
        %v3123 = vmul.f32 1.0, %v3122
        %v3124 = vrcp.pop %v3074
        %v3125 = vmul.f32 1.0, %v3124
        %v3126 = vrcp.pop %v3075
        %v3127 = vmul.f32 1.0, %v3126
        %v3128 = vrcp.pop %v3076
        %v3129 = vmul.f32 1.0, %v3128
        %v3130 = vrcp.pop %v3077
        %v3131 = vmul.f32 1.0, %v3130
        %v3132 = vrcp.pop %v3078
        %v3133 = vmul.f32 1.0, %v3132
        %v3134 = vrcp.pop %v3079
        %v3135 = vmul.f32 1.0, %v3134
        %v3136 = vrcp.pop %v3080
        %v3137 = vmul.f32 1.0, %v3136
        %v3138 = vrcp.pop %v3081
        %v3139 = vmul.f32 1.0, %v3138
        %v3140 = vrcp.pop %v3082
        %v3141 = vmul.f32 1.0, %v3140
        %v3142 = vrcp.pop %v3083
        %v3143 = vmul.f32 1.0, %v3142
        %v3144 = vrcp.pop %v3084
        %v3145 = vmul.f32 1.0, %v3144
        %v3146 = vrcp.pop %v3085
        %v3147 = vmul.f32 1.0, %v3146
        %v3148 = vrcp.pop %v3086
        %v3149 = vmul.f32 1.0, %v3148
        %v3150 = vrcp.pop %v3087
        %v3151 = vmul.f32 1.0, %v3150
        %v3152 = vmul.f32 %v2928, %v3089
        %v3153 = vmul.f32 %v2929, %v3091
        %v3154 = vmul.f32 %v2930, %v3093
        %v3155 = vmul.f32 %v2931, %v3095
        %v3156 = vmul.f32 %v2932, %v3097
        %v3157 = vmul.f32 %v2933, %v3099
        %v3158 = vmul.f32 %v2934, %v3101
        %v3159 = vmul.f32 %v2935, %v3103
        %v3160 = vmul.f32 %v2936, %v3105
        %v3161 = vmul.f32 %v2937, %v3107
        %v3162 = vmul.f32 %v2938, %v3109
        %v3163 = vmul.f32 %v2939, %v3111
        %v3164 = vmul.f32 %v2940, %v3113
        %v3165 = vmul.f32 %v2941, %v3115
        %v3166 = vmul.f32 %v2942, %v3117
        %v3167 = vmul.f32 %v2943, %v3119
        %v3168 = vmul.f32 %v2944, %v3121
        %v3169 = vmul.f32 %v2945, %v3123
        %v3170 = vmul.f32 %v2946, %v3125
        %v3171 = vmul.f32 %v2947, %v3127
        %v3172 = vmul.f32 %v2948, %v3129
        %v3173 = vmul.f32 %v2949, %v3131
        %v3174 = vmul.f32 %v2950, %v3133
        %v3175 = vmul.f32 %v2951, %v3135
        %v3176 = vmul.f32 %v2952, %v3137
        %v3177 = vmul.f32 %v2953, %v3139
        %v3178 = vmul.f32 %v2954, %v3141
        %v3179 = vmul.f32 %v2955, %v3143
        %v3180 = vmul.f32 %v2956, %v3145
        %v3181 = vmul.f32 %v2957, %v3147
        %v3182 = vmul.f32 %v2958, %v3149
        %v3183 = vmul.f32 %v2959, %v3151
        %3184 = vst [vmem:[%s163] sm:$0xff] %v3152
        %3185 = vst [vmem:[%s163 + $0x8] sm:$0xff] %v3153
        %3186 = vst [vmem:[%s163 + $0x10] sm:$0xff] %v3154
        %3187 = vst [vmem:[%s163 + $0x18] sm:$0xff] %v3155
        %3188 = vst [vmem:[%s163 + $0x20] sm:$0xff] %v3156
        %3189 = vst [vmem:[%s163 + $0x28] sm:$0xff] %v3157
        %3190 = vst [vmem:[%s163 + $0x30] sm:$0xff] %v3158
        %3191 = vst [vmem:[%s163 + $0x38] sm:$0xff] %v3159
        %3192 = vst [vmem:[%s163 + $0x40] sm:$0xff] %v3160
        %3193 = vst [vmem:[%s163 + $0x48] sm:$0xff] %v3161
        %3194 = vst [vmem:[%s163 + $0x50] sm:$0xff] %v3162
        %3195 = vst [vmem:[%s163 + $0x58] sm:$0xff] %v3163
        %3196 = vst [vmem:[%s163 + $0x60] sm:$0xff] %v3164
        %3197 = vst [vmem:[%s163 + $0x68] sm:$0xff] %v3165
        %3198 = vst [vmem:[%s163 + $0x70] sm:$0xff] %v3166
        %3199 = vst [vmem:[%s163 + $0x78] sm:$0xff] %v3167
        %3200 = vst [vmem:[%s163 + $0x80] sm:$0xff] %v3168
        %3201 = vst [vmem:[%s163 + $0x88] sm:$0xff] %v3169
        %3202 = vst [vmem:[%s163 + $0x90] sm:$0xff] %v3170
        %3203 = vst [vmem:[%s163 + $0x98] sm:$0xff] %v3171
        %3204 = vst [vmem:[%s163 + $0xa0] sm:$0xff] %v3172
        %3205 = vst [vmem:[%s163 + $0xa8] sm:$0xff] %v3173
        %3206 = vst [vmem:[%s163 + $0xb0] sm:$0xff] %v3174
        %3207 = vst [vmem:[%s163 + $0xb8] sm:$0xff] %v3175
        %3208 = vst [vmem:[%s163 + $0xc0] sm:$0xff] %v3176
        %3209 = vst [vmem:[%s163 + $0xc8] sm:$0xff] %v3177
        %3210 = vst [vmem:[%s163 + $0xd0] sm:$0xff] %v3178
        %3211 = vst [vmem:[%s163 + $0xd8] sm:$0xff] %v3179
        %3212 = vst [vmem:[%s163 + $0xe0] sm:$0xff] %v3180
        %3213 = vst [vmem:[%s163 + $0xe8] sm:$0xff] %v3181
        %3214 = vst [vmem:[%s163 + $0xf0] sm:$0xff] %v3182
        %3215 = vst [vmem:[%s163 + $0xf8] sm:$0xff] %v3183
        %s3216 = sand.u32 %s93, 1
        %s3217 = scalar_lea.sflag [#allocation3], %s3216
        %s3218 = sand.u32 %s93, 1
        %s3219 = smul.addr %s3218, 256
        %s3220 = scalar_lea.vmem [#allocation2], %s3219
        // Predicated region
        $region33: #{tpu_custom_call.1} parent=31 // pred_check
          %p3221 = pneg %p103
        $region34: #{tpu_custom_call.1} parent=31 // pred_check_branch
          %3223 = sbr.rel (%p3221) target = $region36
        $region35: #{tpu_custom_call.1} parent=31 // pred_region
          %s3224 = smul.u32 32, %s17
          %s3226 = ssub.s32 4096, 4096
          %3227 = vsyncadd %s3217, %s3226
          %s3228 = smul.addr %s3224, 128
          %s3229 = scalar_lea.hbm %s3, %s3228
          %s3230 = sshll.u32 %s3220, 4
          %s3231 = int_to_ptr.vmem [resolvable:$true] %s3230
          %3236 = dma.vmem_to_hbm [thread:$0]  %s3231, 4096, %s3229, %s3217, 128, 128, 8
        $region36: #{tpu_custom_call.1} parent=31 // pred_fallthru
          _
      $region32: #{tpu_custom_call.1} parent=5 // pred_fallthru
        _
      %p3237 = scmp.le.s32.totalorder 2, %s12
      // Predicated region
      $region37: #{tpu_custom_call.1} parent=5 // pred_check
        %p3238 = pneg %p3237
      $region38: #{tpu_custom_call.1} parent=5 // pred_check_branch
        %3240 = sbr.rel (%p3238) target = $region40
      $region39: #{tpu_custom_call.1} parent=5 // pred_region
        %s3241 = ssub.s32 %s12, 2
        // Predicated region
        $region41: #{tpu_custom_call.1} parent=39 // pred_check
          %p3242 = pneg %p109
        $region42: #{tpu_custom_call.1} parent=39 // pred_check_branch
          %3244 = sbr.rel (%p3242) target = $region44
        $region43: #{tpu_custom_call.1} parent=39 // pred_region
          %s3245 = sand.u32 %s94, 1
          %s3246 = scalar_lea.sflag [#allocation3], %s3245
          %s3247 = sand.u32 %s94, 1
          %s3248 = smul.addr %s3247, 256
          %s3249 = scalar_lea.vmem [#allocation2], %s3248
          %3250 = dma.done %s3246, 4096
        $region44: #{tpu_custom_call.1} parent=39 // pred_fallthru
          _
      $region40: #{tpu_custom_call.1} parent=5 // pred_fallthru
        _
    $region6: #{tpu_custom_call.1} parent=1 // loop_footer
      %s16 = sadd.s32 1, %s12
    $region7: #{tpu_custom_call.1} parent=1 // loop_footer_branch
      %11 = sbr.rel target = $region3
    $region8: #{tpu_custom_call.1} parent=1 // loop_exit
      _
    %3251 = vsyncpa [#allocation3], 1
    %s3252 = scalar_lea.sflag [#allocation3], 1
    %3253 = vsyncpa %s3252, 1

</llo_original>
